<compile_context>
chip_gen: v7x
topology: tpu7x:2x2x1
jax: 0.10.0
libtpu: 0.0.40
codegen_flags: <defaults>
</compile_context>

<pallas_src>
import math

import jax
import jax.numpy as jnp
from jax import lax
from jax.experimental import pallas as pl
from jax.experimental.pallas import tpu as pltpu


def _attn_kernel(q_ref, k_ref, v_ref, o_ref, w_ref):
    # Blocks: q (G, TQ, D); k/v (G, Sk, D); o (G, TQ, D); w (G, TQ, Sk).
    d_k = q_ref.shape[-1]
    scale = 1.0 / math.sqrt(d_k)

    # Fold 1/sqrt(D) into Q (Sq*D multiplies instead of Sq*Sk).  Keep operands
    # in their native dtype so the MXU runs at full rate; accumulate in f32.
    q = q_ref[...] * jnp.asarray(scale, dtype=q_ref.dtype)
    k = k_ref[...]
    v = v_ref[...]

    # Q @ K^T with the transpose absorbed into the contraction (no explicit
    # k.T relayout): contract the last dim of both operands, batch over heads.
    scores = lax.dot_general(
        q, k,
        dimension_numbers=(((2,), (2,)), ((0,), (0,))),
        preferred_element_type=jnp.float32,
    )  # (G, TQ, Sk), f32

    # Numerically-stable softmax along the last axis; statistics stay in f32.
    m = jnp.max(scores, axis=-1, keepdims=True)
    e = jnp.exp(scores - m)
    denom = jnp.sum(e, axis=-1, keepdims=True)
    # One reciprocal per row on the EUP + a Newton refinement to recover f32
    # accuracy, then a broadcast multiply instead of per-element divides.
    inv = pl.reciprocal(denom, approx=True)
    inv = inv * (2.0 - denom * inv)
    weights = e * inv  # (G, TQ, Sk), f32

    # weights @ V: feed the MXU in V's native dtype, accumulate in f32.
    out = lax.dot_general(
        weights.astype(v_ref.dtype), v,
        dimension_numbers=(((2,), (1,)), ((0,), (0,))),
        preferred_element_type=jnp.float32,
    )  # (G, TQ, D), f32

    o_ref[...] = out.astype(o_ref.dtype)
    w_ref[...] = weights.astype(w_ref.dtype)


def _choose_tiles(BH, Sq, Sk, D, itemsize, *, max_q_tile, min_bytes_per_step,
                  vmem_budget_bytes):
    """Pick (G heads-per-step, TQ query-tile) honoring VMEM and overhead."""
    # Query tile: full extent when small (always legal); otherwise a multiple
    # of 8 (sublane constraint), preferring one that divides Sq so there is no
    # ragged tail block wasting compute.
    if Sq <= max_q_tile:
        TQ = Sq
    else:
        TQ = (max_q_tile // 8) * 8
        t = TQ
        while t >= 8:
            if Sq % t == 0:
                TQ = t
                break
            t -= 8

    def step_bytes(g):
        # q + k + v in, o + w out, per grid step (single-buffered).
        return (g * TQ * D + 2 * g * Sk * D + g * TQ * D + g * TQ * Sk) * itemsize

    divisors = [d for d in range(1, BH + 1) if BH % d == 0]
    # Double-buffering roughly doubles the footprint; leave headroom for the
    # f32 scores/weights intermediates as well.
    fitting = [d for d in divisors if 2 * step_bytes(d) <= vmem_budget_bytes]
    if not fitting:
        return 1, TQ
    cleared = [d for d in fitting if step_bytes(d) >= min_bytes_per_step]
    G = cleared[0] if cleared else fitting[-1]
    return G, TQ


def scaled_dot_product_attention(query, key, value, *, max_q_tile=256,
                                 min_bytes_per_step=256 * 1024):
    """query: (B, H, Sq, D); key/value: (B, H, Sk, D).

    Returns (output (B, H, Sq, D), attention_weights (B, H, Sq, Sk)),
    matching the PyTorch module's forward.  Weights are returned in
    query.dtype (bf16 inputs -> bf16-rounded weights).
    """
    B, H, Sq, D = query.shape
    Sk = key.shape[-2]
    BH = B * H

    q = query.reshape(BH, Sq, D)
    k = key.reshape(BH, Sk, D)
    v = value.reshape(BH, Sk, D)

    vmem_limit = 48 * 1024 * 1024
    itemsize = jnp.dtype(query.dtype).itemsize
    G, TQ = _choose_tiles(
        BH, Sq, Sk, D, itemsize,
        max_q_tile=max_q_tile,
        min_bytes_per_step=min_bytes_per_step,
        vmem_budget_bytes=vmem_limit // 2,
    )
    n_q = pl.cdiv(Sq, TQ)

    out_shapes = (
        jax.ShapeDtypeStruct((BH, Sq, D), query.dtype),
        jax.ShapeDtypeStruct((BH, Sq, Sk), query.dtype),
    )

    grid_spec = pltpu.PrefetchScalarGridSpec(
        num_scalar_prefetch=0,
        # qi is the innermost grid axis; K/V index_maps ignore it, so the same
        # K/V block stays resident (no re-DMA) across the query tiles of a
        # head group.
        grid=(BH // G, n_q),
        in_specs=[
            pl.BlockSpec((G, TQ, D), lambda g, qi: (g, qi, 0)),
            pl.BlockSpec((G, Sk, D), lambda g, qi: (g, 0, 0)),
            pl.BlockSpec((G, Sk, D), lambda g, qi: (g, 0, 0)),
        ],
        out_specs=[
            pl.BlockSpec((G, TQ, D), lambda g, qi: (g, qi, 0)),
            pl.BlockSpec((G, TQ, Sk), lambda g, qi: (g, qi, 0)),
        ],
    )

    # Advisory cost estimate so XLA schedules around the custom call sensibly.
    flops = 2 * 2 * BH * Sq * Sk * D  # QK^T and weights@V
    bytes_accessed = (
        (BH * Sq * D + 2 * BH * Sk * D) * itemsize      # reads
        + (BH * Sq * D + BH * Sq * Sk) * itemsize       # writes
    )
    cost = pl.CostEstimate(flops=flops,
                           transcendentals=BH * Sq * Sk,
                           bytes_accessed=bytes_accessed)

    out, weights = pl.pallas_call(
        _attn_kernel,
        out_shape=out_shapes,
        grid_spec=grid_spec,
        compiler_params=pltpu.CompilerParams(
            dimension_semantics=("parallel", "parallel"),
            # Above the 16/32 MiB default scoped limits (v5e/v6e), still well
            # below v7x's 64 MiB physical VMEM.
            vmem_limit_bytes=vmem_limit,
        ),
        cost_estimate=cost,
    )(q, k, v)

    return out.reshape(B, H, Sq, D), weights.reshape(B, H, Sq, Sk)


def _reference(query, key, value):
    d_k = query.shape[-1]
    scores = jnp.einsum("bhqd,bhkd->bhqk", query, key) / math.sqrt(d_k)
    w = jax.nn.softmax(scores, axis=-1)
    out = jnp.einsum("bhqk,bhkd->bhqd", w, value)
    return out, w


if __name__ == "__main__":
    # Small deterministic shapes: batch=2, heads=4, seq=8, head_dim=32.
    B, H, S, D = 2, 4, 8, 32
    key0 = jax.random.PRNGKey(0)
    kq, kk, kv = jax.random.split(key0, 3)

    query = jax.random.normal(kq, (B, H, S, D), dtype=jnp.float32)
    key_ = jax.random.normal(kk, (B, H, S, D), dtype=jnp.float32)
    value = jax.random.normal(kv, (B, H, S, D), dtype=jnp.float32)

    out, weights = scaled_dot_product_attention(query, key_, value)
    jax.block_until_ready(out)
    jax.block_until_ready(weights)

    ref_out, ref_w = _reference(query, key_, value)
    assert jnp.allclose(out, ref_out, atol=1e-4, rtol=1e-4), \
        float(jnp.max(jnp.abs(out - ref_out)))
    assert jnp.allclose(weights, ref_w, atol=1e-4, rtol=1e-4), \
        float(jnp.max(jnp.abs(weights - ref_w)))

    print("KERNEL_OK")
</pallas_src>

<mosaic_0001>
module attributes {stable_mosaic.version = 11 : i64} {
  func.func @_attn_kernel(%arg0: i32, %arg1: i32, %arg2: memref<8x8x32xf32, #tpu.memory_space<vmem>>, %arg3: memref<8x8x32xf32, #tpu.memory_space<vmem>>, %arg4: memref<8x8x32xf32, #tpu.memory_space<vmem>>, %arg5: memref<8x8x32xf32, #tpu.memory_space<vmem>>, %arg6: memref<8x8x8xf32, #tpu.memory_space<vmem>>) attributes {dimension_semantics = [#tpu.dimension_semantics<parallel>, #tpu.dimension_semantics<parallel>], iteration_bounds = array<i64: 1, 1>, scalar_prefetch = 0 : i64, scratch_operands = 0 : i64, tpu.core_type = #tpu.core_type<tc>, window_params = [{transform_indices = @transform_0, window_bounds = array<i64: 8, 8, 32>}, {transform_indices = @transform_1, window_bounds = array<i64: 8, 8, 32>}, {transform_indices = @transform_2, window_bounds = array<i64: 8, 8, 32>}, {transform_indices = @transform_3, window_bounds = array<i64: 8, 8, 32>}, {transform_indices = @transform_4, window_bounds = array<i64: 8, 8, 8>}]} {
    %c0 = arith.constant 0 : index
    %c0_0 = arith.constant 0 : index
    %c0_1 = arith.constant 0 : index
    %0 = vector.load %arg2[%c0, %c0_0, %c0_1] : memref<8x8x32xf32, #tpu.memory_space<vmem>>, vector<8x8x32xf32>
    %cst = arith.constant 0.176776692 : f32
    %1 = vector.broadcast %cst : f32 to vector<8x8x32xf32>
    %2 = arith.mulf %0, %1 : vector<8x8x32xf32>
    %c0_2 = arith.constant 0 : index
    %c0_3 = arith.constant 0 : index
    %c0_4 = arith.constant 0 : index
    %3 = vector.load %arg3[%c0_2, %c0_3, %c0_4] : memref<8x8x32xf32, #tpu.memory_space<vmem>>, vector<8x8x32xf32>
    %c0_5 = arith.constant 0 : index
    %c0_6 = arith.constant 0 : index
    %c0_7 = arith.constant 0 : index
    %4 = vector.load %arg4[%c0_5, %c0_6, %c0_7] : memref<8x8x32xf32, #tpu.memory_space<vmem>>, vector<8x8x32xf32>
    %cst_8 = arith.constant dense<0.000000e+00> : vector<8x8x8xf32>
    %5 = tpu.matmul %2, %3, %cst_8 {dimension_numbers = #tpu.dot_dimension_numbers<[2], [2], [1], [1], [0, 0, 0, 1, 1, 1], [0], [0]>} : vector<8x8x32xf32>, vector<8x8x32xf32>, vector<8x8x8xf32> -> vector<8x8x8xf32>
    %cst_9 = arith.constant dense<0xFF800000> : vector<8x8xf32>
    %6 = vector.multi_reduction <maximumf>, %5, %cst_9 [2] : vector<8x8x8xf32> to vector<8x8xf32>
    %7 = vector.shape_cast %6 : vector<8x8xf32> to vector<8x8x1xf32>
    %8 = vector.broadcast %7 : vector<8x8x1xf32> to vector<8x8x8xf32>
    %9 = arith.subf %5, %8 : vector<8x8x8xf32>
    %10 = math.exp %9 : vector<8x8x8xf32>
    %cst_10 = arith.constant dense<0.000000e+00> : vector<8x8xf32>
    %11 = vector.multi_reduction <add>, %10, %cst_10 [2] : vector<8x8x8xf32> to vector<8x8xf32>
    %12 = vector.shape_cast %11 : vector<8x8xf32> to vector<8x8x1xf32>
    %13 = tpu.reciprocal %12 {approx = true} : vector<8x8x1xf32> -> vector<8x8x1xf32>
    %14 = arith.mulf %12, %13 : vector<8x8x1xf32>
    %cst_11 = arith.constant 2.000000e+00 : f32
    %15 = vector.broadcast %cst_11 : f32 to vector<8x8x1xf32>
    %16 = arith.subf %15, %14 : vector<8x8x1xf32>
    %17 = arith.mulf %13, %16 : vector<8x8x1xf32>
    %18 = vector.broadcast %17 : vector<8x8x1xf32> to vector<8x8x8xf32>
    %19 = arith.mulf %10, %18 : vector<8x8x8xf32>
    %cst_12 = arith.constant dense<0.000000e+00> : vector<8x8x32xf32>
    %20 = tpu.matmul %19, %4, %cst_12 {dimension_numbers = #tpu.dot_dimension_numbers<[2], [1], [1], [2], [0, 0, 0, 1, 1, 2], [0], [0]>} : vector<8x8x8xf32>, vector<8x8x32xf32>, vector<8x8x32xf32> -> vector<8x8x32xf32>
    %c0_13 = arith.constant 0 : index
    %c0_14 = arith.constant 0 : index
    %c0_15 = arith.constant 0 : index
    %21 = vector.load %arg5[%c0_13, %c0_14, %c0_15] : memref<8x8x32xf32, #tpu.memory_space<vmem>>, vector<8x8x32xf32>
    tpu.vector_store %arg5[%c0_13, %c0_14, %c0_15], %20 {strides = array<i32>} : memref<8x8x32xf32, #tpu.memory_space<vmem>>, vector<8x8x32xf32>,
    %c0_16 = arith.constant 0 : index
    %c0_17 = arith.constant 0 : index
    %c0_18 = arith.constant 0 : index
    %22 = vector.load %arg6[%c0_16, %c0_17, %c0_18] : memref<8x8x8xf32, #tpu.memory_space<vmem>>, vector<8x8x8xf32>
    tpu.vector_store %arg6[%c0_16, %c0_17, %c0_18], %19 {strides = array<i32>} : memref<8x8x8xf32, #tpu.memory_space<vmem>>, vector<8x8x8xf32>,
    return
  }
  func.func @transform_0(%arg0: i32, %arg1: i32) -> (i32, i32, i32) {
    %c0_i32 = arith.constant 0 : i32
    %c0_i32_0 = arith.constant 0 : i32
    return %arg0, %arg1, %c0_i32 : i32, i32, i32
  }
  func.func @transform_1(%arg0: i32, %arg1: i32) -> (i32, i32, i32) {
    %c0_i32 = arith.constant 0 : i32
    %c0_i32_0 = arith.constant 0 : i32
    %c0_i32_1 = arith.constant 0 : i32
    return %arg0, %c0_i32, %c0_i32_0 : i32, i32, i32
  }
  func.func @transform_2(%arg0: i32, %arg1: i32) -> (i32, i32, i32) {
    %c0_i32 = arith.constant 0 : i32
    %c0_i32_0 = arith.constant 0 : i32
    %c0_i32_1 = arith.constant 0 : i32
    return %arg0, %c0_i32, %c0_i32_0 : i32, i32, i32
  }
  func.func @transform_3(%arg0: i32, %arg1: i32) -> (i32, i32, i32) {
    %c0_i32 = arith.constant 0 : i32
    %c0_i32_0 = arith.constant 0 : i32
    return %arg0, %arg1, %c0_i32 : i32, i32, i32
  }
  func.func @transform_4(%arg0: i32, %arg1: i32) -> (i32, i32, i32) {
    %c0_i32 = arith.constant 0 : i32
    %c0_i32_0 = arith.constant 0 : i32
    return %arg0, %arg1, %c0_i32 : i32, i32, i32
  }
}

</mosaic_0001>

<llo_original>
// kernel: tpu_custom_call.1
$region0: #{tpu_custom_call.1}
  #allocation0 [shape = 'u32[]', space=smem, size = 0x4, offset = 0x4, fixed_abs, tag = 'smem constant byte address 0x4 - core index']
  #allocation1 [shape = 'u32[144,128]{1,0:T(1,128)}', space=vmem, size = 0x12000, scoped, tag = 'internal scratch']
  %s0 = inlined_call_operand.hbm [shape: f32[8,8,32], index: 0, kind: input, shape index: {}]
  %s1 = inlined_call_operand.hbm [shape: f32[8,8,32], index: 1, kind: input, shape index: {}]
  %s2 = inlined_call_operand.hbm [shape: f32[8,8,32], index: 2, kind: input, shape index: {}]
  %s3 = inlined_call_operand.hbm [shape: f32[8,8,32], index: 3, kind: output, shape index: {0}]
  %s4 = inlined_call_operand.hbm [shape: f32[8,8,8], index: 4, kind: output, shape index: {1}]
  %5 = xla_tuple %s3, %s4
  %s6 = sld [smem:[#allocation0]]
  $region42: #{tpu_custom_call.1} parent=0
    _
  %s8 = ssub.s32 1, %s6
  %s9 = scalar_select 0, %s8, %s6
  $region1: #{tpu_custom_call.1} parent=0
    #allocation2 [shape = 'u8[32768]{0}', space=vmem, size = 0x8000, scoped, tag = 'input window, operand 0, single buffered']
    #allocation3 [shape = 's32[1]{0}', space=sflag, size = 0x4, scoped, tag = 'scoped memory for tpu_custom_call.1']
    #allocation4 [shape = 's32[1]{0}', space=sflag, size = 0x4, scoped, tag = 'scoped memory for tpu_custom_call.1']
    #allocation5 [shape = 'u8[32768]{0}', space=vmem, size = 0x8000, scoped, tag = 'input window, operand 1, single buffered']
    #allocation6 [shape = 's32[1]{0}', space=sflag, size = 0x4, scoped, tag = 'scoped memory for tpu_custom_call.1']
    #allocation7 [shape = 'u8[32768]{0}', space=vmem, size = 0x8000, scoped, tag = 'input window, operand 2, single buffered']
    #allocation8 [shape = 'u8[32768]{0}', space=vmem, size = 0x8000, scoped, tag = 'output window, operand 0, single buffered']
    #allocation9 [shape = 'u8[32768]{0}', space=vmem, size = 0x8000, scoped, tag = 'output window, operand 1, single buffered']
    #allocation10 [shape = 's32[1]{0}', space=sflag, size = 0x4, scoped, tag = 'scoped memory for tpu_custom_call.1']
    %10 = vsyncpa [#allocation3], 0
    %11 = vsyncpa [#allocation6], 0
    %12 = vsyncpa [#allocation4], 0
    %13 = vsyncpa [#allocation10], 0
    // Predicated region
    $region2: #{tpu_custom_call.1} parent=1 // pred_check
      _
    $region3: #{tpu_custom_call.1} parent=1 // pred_check_branch
      %15 = sbr.rel (0) target = $region5
    $region4: #{tpu_custom_call.1} parent=1 // pred_region
      %s17 = ssub.s32 1024, 1024
      %18 = vsyncadd [#allocation3], %s17
      %s19 = sshll.u32 [#allocation2], 4
      %s20 = int_to_ptr.vmem [resolvable:$true] %s19
      %25 = dma.hbm_to_vmem [thread:$0]  %s0, 1024, %s20, [#allocation3], 128, 128, 8
    $region5: #{tpu_custom_call.1} parent=1 // pred_fallthru
      _
    // Predicated region
    $region6: #{tpu_custom_call.1} parent=1 // pred_check
      _
    $region7: #{tpu_custom_call.1} parent=1 // pred_check_branch
      %27 = sbr.rel (0) target = $region9
    $region8: #{tpu_custom_call.1} parent=1 // pred_region
      %s29 = ssub.s32 1024, 1024
      %30 = vsyncadd [#allocation6], %s29
      %s31 = sshll.u32 [#allocation5], 4
      %s32 = int_to_ptr.vmem [resolvable:$true] %s31
      %37 = dma.hbm_to_vmem [thread:$0]  %s1, 1024, %s32, [#allocation6], 128, 128, 8
    $region9: #{tpu_custom_call.1} parent=1 // pred_fallthru
      _
    // Predicated region
    $region10: #{tpu_custom_call.1} parent=1 // pred_check
      _
    $region11: #{tpu_custom_call.1} parent=1 // pred_check_branch
      %39 = sbr.rel (0) target = $region13
    $region12: #{tpu_custom_call.1} parent=1 // pred_region
      %s41 = ssub.s32 1024, 1024
      %42 = vsyncadd [#allocation6], %s41
      %s43 = sshll.u32 [#allocation7], 4
      %s44 = int_to_ptr.vmem [resolvable:$true] %s43
      %49 = dma.hbm_to_vmem [thread:$0]  %s2, 1024, %s44, [#allocation6], 128, 128, 8
    $region13: #{tpu_custom_call.1} parent=1 // pred_fallthru
      _
    // Predicated region
    $region14: #{tpu_custom_call.1} parent=1 // pred_check
      _
    $region15: #{tpu_custom_call.1} parent=1 // pred_check_branch
      %51 = sbr.rel (0) target = $region17
    $region16: #{tpu_custom_call.1} parent=1 // pred_region
      %52 = dma.done [#allocation3], 1024
    $region17: #{tpu_custom_call.1} parent=1 // pred_fallthru
      _
    // Predicated region
    $region18: #{tpu_custom_call.1} parent=1 // pred_check
      _
    $region19: #{tpu_custom_call.1} parent=1 // pred_check_branch
      %54 = sbr.rel (0) target = $region21
    $region20: #{tpu_custom_call.1} parent=1 // pred_region
      %55 = dma.done [#allocation6], 1024
    $region21: #{tpu_custom_call.1} parent=1 // pred_fallthru
      _
    // Predicated region
    $region22: #{tpu_custom_call.1} parent=1 // pred_check
      _
    $region23: #{tpu_custom_call.1} parent=1 // pred_check_branch
      %57 = sbr.rel (0) target = $region25
    $region24: #{tpu_custom_call.1} parent=1 // pred_region
      %58 = dma.done [#allocation6], 1024
    $region25: #{tpu_custom_call.1} parent=1 // pred_fallthru
      _
    %v59 = vld [vmem:[#allocation2] sm:$0xff]
    %v60 = vld [vmem:[#allocation2 + $0x8] sm:$0xff]
    %v61 = vld [vmem:[#allocation2 + $0x10] sm:$0xff]
    %v62 = vld [vmem:[#allocation2 + $0x18] sm:$0xff]
    %v63 = vld [vmem:[#allocation2 + $0x20] sm:$0xff]
    %v64 = vld [vmem:[#allocation2 + $0x28] sm:$0xff]
    %v65 = vld [vmem:[#allocation2 + $0x30] sm:$0xff]
    %v66 = vld [vmem:[#allocation2 + $0x38] sm:$0xff]
    %v67 = vmul.f32 %v59, 0.17677669
    %v68 = vmul.f32 %v60, 0.17677669
    %v69 = vmul.f32 %v61, 0.17677669
    %v70 = vmul.f32 %v62, 0.17677669
    %v71 = vmul.f32 %v63, 0.17677669
    %v72 = vmul.f32 %v64, 0.17677669
    %v73 = vmul.f32 %v65, 0.17677669
    %v74 = vmul.f32 %v66, 0.17677669
    %v75 = vld [vmem:[#allocation5] sm:$0xff]
    %v76 = vld [vmem:[#allocation5 + $0x8] sm:$0xff]
    %v77 = vld [vmem:[#allocation5 + $0x10] sm:$0xff]
    %v78 = vld [vmem:[#allocation5 + $0x18] sm:$0xff]
    %v79 = vld [vmem:[#allocation5 + $0x20] sm:$0xff]
    %v80 = vld [vmem:[#allocation5 + $0x28] sm:$0xff]
    %v81 = vld [vmem:[#allocation5 + $0x30] sm:$0xff]
    %v82 = vld [vmem:[#allocation5 + $0x38] sm:$0xff]
    %v83 = vld [vmem:[#allocation7] sm:$0xff]
    %v84 = vld [vmem:[#allocation7 + $0x8] sm:$0xff]
    %v85 = vld [vmem:[#allocation7 + $0x10] sm:$0xff]
    %v86 = vld [vmem:[#allocation7 + $0x18] sm:$0xff]
    %v87 = vld [vmem:[#allocation7 + $0x20] sm:$0xff]
    %v88 = vld [vmem:[#allocation7 + $0x28] sm:$0xff]
    %v89 = vld [vmem:[#allocation7 + $0x30] sm:$0xff]
    %v90 = vld [vmem:[#allocation7 + $0x38] sm:$0xff]
    %vm91 = vcmask 261120
    %v93 = vsel %vm91, %v67, 0
    %v96 = vsel %vm91, %v75, 0
    %98 = vmatprep.subr.mxu0 0.0
    %99 = vmatpush1.xpose.msra.mxu0 %v96
    %100 = vmatprep.subr.mxu0 0.0
    %101 = vmatpush1.xpose.msra.mxu0 0.0
    %102 = vmatprep.subr.mxu0 0.0
    %103 = vmatpush1.xpose.msra.mxu0 0.0
    %104 = vmatprep.subr.mxu0 0.0
    %105 = vmatpush1.xpose.msra.mxu0 0.0
    %106 = vmatprep.subr.mxu0 0.0
    %107 = vmatpush1.xpose.msra.mxu0 0.0
    %108 = vmatprep.subr.mxu0 0.0
    %109 = vmatpush1.xpose.msra.mxu0 0.0
    %110 = vmatprep.subr.mxu0 0.0
    %111 = vmatpush1.xpose.msra.mxu0 0.0
    %112 = vmatprep.subr.mxu0 0.0
    %113 = vmatpush1.xpose.msra.mxu0 0.0
    %114 = vmatprep.subr.mxu0 0.0
    %115 = vmatpush1.xpose.msra.mxu0 0.0
    %116 = vmatprep.subr.mxu0 0.0
    %117 = vmatpush1.xpose.msra.mxu0 0.0
    %118 = vmatprep.subr.mxu0 0.0
    %119 = vmatpush1.xpose.msra.mxu0 0.0
    %120 = vmatprep.subr.mxu0 0.0
    %121 = vmatpush1.xpose.msra.mxu0 0.0
    %122 = vmatprep.subr.mxu0 0.0
    %123 = vmatpush1.xpose.msra.mxu0 0.0
    %124 = vmatprep.subr.mxu0 0.0
    %125 = vmatpush1.xpose.msra.mxu0 0.0
    %126 = vmatprep.subr.mxu0 0.0
    %127 = vmatpush1.xpose.msra.mxu0 0.0
    %128 = vmatprep.subr.mxu0 0.0
    %129 = vmatpush1.xpose.msra.mxu0 0.0
    %130 = vmatprep.subr.mxu0 0.0
    %131 = vmatpush1.xpose.msra.mxu0 0.0
    %132 = vmatprep.subr.mxu0 0.0
    %133 = vmatpush1.xpose.msra.mxu0 0.0
    %134 = vmatprep.subr.mxu0 0.0
    %135 = vmatpush1.xpose.msra.mxu0 0.0
    %136 = vmatprep.subr.mxu0 0.0
    %137 = vmatpush1.xpose.msra.mxu0 0.0
    %138 = vmatprep.subr.mxu0 0.0
    %139 = vmatpush1.xpose.msra.mxu0 0.0
    %140 = vmatprep.subr.mxu0 0.0
    %141 = vmatpush1.xpose.msra.mxu0 0.0
    %142 = vmatprep.subr.mxu0 0.0
    %143 = vmatpush1.xpose.msra.mxu0 0.0
    %144 = vmatprep.subr.mxu0 0.0
    %145 = vmatpush1.xpose.msra.mxu0 0.0
    %146 = vmatprep.subr.mxu0 0.0
    %147 = vmatpush1.xpose.msra.mxu0 0.0
    %148 = vmatprep.subr.mxu0 0.0
    %149 = vmatpush1.xpose.msra.mxu0 0.0
    %150 = vmatprep.subr.mxu0 0.0
    %151 = vmatpush1.xpose.msra.mxu0 0.0
    %152 = vmatprep.subr.mxu0 0.0
    %153 = vmatpush1.xpose.msra.mxu0 0.0
    %154 = vmatprep.subr.mxu0 0.0
    %155 = vmatpush1.xpose.msra.mxu0 0.0
    %156 = vmatprep.subr.mxu0 0.0
    %157 = vmatpush1.xpose.msra.mxu0 0.0
    %158 = vmatprep.subr.mxu0 0.0
    %159 = vmatpush1.xpose.msra.mxu0 0.0
    %160 = vmatprep.subr.mxu0 0.0
    %161 = vmatpush1.xpose.msra.mxu0 0.0
    %162 = vmatprep.mubr.f32.mxu0 0.0
    %163 = vmatmul.mubr.f32.gmra.mrb[0].mxu0 %v93
    %v164 = vpop.f32.mrb[0].mxu0
    %v165 = vadd.f32 0.0, %v164
    %v166 = vpop.f32.mrb[0].mxu0
    %167 = vdwg.mxu0
    %v169 = vsel %vm91, %v68, 0
    %v172 = vsel %vm91, %v76, 0
    %174 = vmatprep.subr.mxu0 0.0
    %175 = vmatpush1.xpose.msra.mxu0 %v172
    %176 = vmatprep.subr.mxu0 0.0
    %177 = vmatpush1.xpose.msra.mxu0 0.0
    %178 = vmatprep.subr.mxu0 0.0
    %179 = vmatpush1.xpose.msra.mxu0 0.0
    %180 = vmatprep.subr.mxu0 0.0
    %181 = vmatpush1.xpose.msra.mxu0 0.0
    %182 = vmatprep.subr.mxu0 0.0
    %183 = vmatpush1.xpose.msra.mxu0 0.0
    %184 = vmatprep.subr.mxu0 0.0
    %185 = vmatpush1.xpose.msra.mxu0 0.0
    %186 = vmatprep.subr.mxu0 0.0
    %187 = vmatpush1.xpose.msra.mxu0 0.0
    %188 = vmatprep.subr.mxu0 0.0
    %189 = vmatpush1.xpose.msra.mxu0 0.0
    %190 = vmatprep.subr.mxu0 0.0
    %191 = vmatpush1.xpose.msra.mxu0 0.0
    %192 = vmatprep.subr.mxu0 0.0
    %193 = vmatpush1.xpose.msra.mxu0 0.0
    %194 = vmatprep.subr.mxu0 0.0
    %195 = vmatpush1.xpose.msra.mxu0 0.0
    %196 = vmatprep.subr.mxu0 0.0
    %197 = vmatpush1.xpose.msra.mxu0 0.0
    %198 = vmatprep.subr.mxu0 0.0
    %199 = vmatpush1.xpose.msra.mxu0 0.0
    %200 = vmatprep.subr.mxu0 0.0
    %201 = vmatpush1.xpose.msra.mxu0 0.0
    %202 = vmatprep.subr.mxu0 0.0
    %203 = vmatpush1.xpose.msra.mxu0 0.0
    %204 = vmatprep.subr.mxu0 0.0
    %205 = vmatpush1.xpose.msra.mxu0 0.0
    %206 = vmatprep.subr.mxu0 0.0
    %207 = vmatpush1.xpose.msra.mxu0 0.0
    %208 = vmatprep.subr.mxu0 0.0
    %209 = vmatpush1.xpose.msra.mxu0 0.0
    %210 = vmatprep.subr.mxu0 0.0
    %211 = vmatpush1.xpose.msra.mxu0 0.0
    %212 = vmatprep.subr.mxu0 0.0
    %213 = vmatpush1.xpose.msra.mxu0 0.0
    %214 = vmatprep.subr.mxu0 0.0
    %215 = vmatpush1.xpose.msra.mxu0 0.0
    %216 = vmatprep.subr.mxu0 0.0
    %217 = vmatpush1.xpose.msra.mxu0 0.0
    %218 = vmatprep.subr.mxu0 0.0
    %219 = vmatpush1.xpose.msra.mxu0 0.0
    %220 = vmatprep.subr.mxu0 0.0
    %221 = vmatpush1.xpose.msra.mxu0 0.0
    %222 = vmatprep.subr.mxu0 0.0
    %223 = vmatpush1.xpose.msra.mxu0 0.0
    %224 = vmatprep.subr.mxu0 0.0
    %225 = vmatpush1.xpose.msra.mxu0 0.0
    %226 = vmatprep.subr.mxu0 0.0
    %227 = vmatpush1.xpose.msra.mxu0 0.0
    %228 = vmatprep.subr.mxu0 0.0
    %229 = vmatpush1.xpose.msra.mxu0 0.0
    %230 = vmatprep.subr.mxu0 0.0
    %231 = vmatpush1.xpose.msra.mxu0 0.0
    %232 = vmatprep.subr.mxu0 0.0
    %233 = vmatpush1.xpose.msra.mxu0 0.0
    %234 = vmatprep.subr.mxu0 0.0
    %235 = vmatpush1.xpose.msra.mxu0 0.0
    %236 = vmatprep.subr.mxu0 0.0
    %237 = vmatpush1.xpose.msra.mxu0 0.0
    %238 = vmatprep.mubr.f32.mxu0 0.0
    %239 = vmatmul.mubr.f32.gmra.mrb[0].mxu0 %v169
    %v240 = vpop.f32.mrb[0].mxu0
    %v241 = vadd.f32 0.0, %v240
    %v242 = vpop.f32.mrb[0].mxu0
    %243 = vdwg.mxu0
    %v245 = vsel %vm91, %v69, 0
    %v248 = vsel %vm91, %v77, 0
    %250 = vmatprep.subr.mxu0 0.0
    %251 = vmatpush1.xpose.msra.mxu0 %v248
    %252 = vmatprep.subr.mxu0 0.0
    %253 = vmatpush1.xpose.msra.mxu0 0.0
    %254 = vmatprep.subr.mxu0 0.0
    %255 = vmatpush1.xpose.msra.mxu0 0.0
    %256 = vmatprep.subr.mxu0 0.0
    %257 = vmatpush1.xpose.msra.mxu0 0.0
    %258 = vmatprep.subr.mxu0 0.0
    %259 = vmatpush1.xpose.msra.mxu0 0.0
    %260 = vmatprep.subr.mxu0 0.0
    %261 = vmatpush1.xpose.msra.mxu0 0.0
    %262 = vmatprep.subr.mxu0 0.0
    %263 = vmatpush1.xpose.msra.mxu0 0.0
    %264 = vmatprep.subr.mxu0 0.0
    %265 = vmatpush1.xpose.msra.mxu0 0.0
    %266 = vmatprep.subr.mxu0 0.0
    %267 = vmatpush1.xpose.msra.mxu0 0.0
    %268 = vmatprep.subr.mxu0 0.0
    %269 = vmatpush1.xpose.msra.mxu0 0.0
    %270 = vmatprep.subr.mxu0 0.0
    %271 = vmatpush1.xpose.msra.mxu0 0.0
    %272 = vmatprep.subr.mxu0 0.0
    %273 = vmatpush1.xpose.msra.mxu0 0.0
    %274 = vmatprep.subr.mxu0 0.0
    %275 = vmatpush1.xpose.msra.mxu0 0.0
    %276 = vmatprep.subr.mxu0 0.0
    %277 = vmatpush1.xpose.msra.mxu0 0.0
    %278 = vmatprep.subr.mxu0 0.0
    %279 = vmatpush1.xpose.msra.mxu0 0.0
    %280 = vmatprep.subr.mxu0 0.0
    %281 = vmatpush1.xpose.msra.mxu0 0.0
    %282 = vmatprep.subr.mxu0 0.0
    %283 = vmatpush1.xpose.msra.mxu0 0.0
    %284 = vmatprep.subr.mxu0 0.0
    %285 = vmatpush1.xpose.msra.mxu0 0.0
    %286 = vmatprep.subr.mxu0 0.0
    %287 = vmatpush1.xpose.msra.mxu0 0.0
    %288 = vmatprep.subr.mxu0 0.0
    %289 = vmatpush1.xpose.msra.mxu0 0.0
    %290 = vmatprep.subr.mxu0 0.0
    %291 = vmatpush1.xpose.msra.mxu0 0.0
    %292 = vmatprep.subr.mxu0 0.0
    %293 = vmatpush1.xpose.msra.mxu0 0.0
    %294 = vmatprep.subr.mxu0 0.0
    %295 = vmatpush1.xpose.msra.mxu0 0.0
    %296 = vmatprep.subr.mxu0 0.0
    %297 = vmatpush1.xpose.msra.mxu0 0.0
    %298 = vmatprep.subr.mxu0 0.0
    %299 = vmatpush1.xpose.msra.mxu0 0.0
    %300 = vmatprep.subr.mxu0 0.0
    %301 = vmatpush1.xpose.msra.mxu0 0.0
    %302 = vmatprep.subr.mxu0 0.0
    %303 = vmatpush1.xpose.msra.mxu0 0.0
    %304 = vmatprep.subr.mxu0 0.0
    %305 = vmatpush1.xpose.msra.mxu0 0.0
    %306 = vmatprep.subr.mxu0 0.0
    %307 = vmatpush1.xpose.msra.mxu0 0.0
    %308 = vmatprep.subr.mxu0 0.0
    %309 = vmatpush1.xpose.msra.mxu0 0.0
    %310 = vmatprep.subr.mxu0 0.0
    %311 = vmatpush1.xpose.msra.mxu0 0.0
    %312 = vmatprep.subr.mxu0 0.0
    %313 = vmatpush1.xpose.msra.mxu0 0.0
    %314 = vmatprep.mubr.f32.mxu0 0.0
    %315 = vmatmul.mubr.f32.gmra.mrb[0].mxu0 %v245
    %v316 = vpop.f32.mrb[0].mxu0
    %v317 = vadd.f32 0.0, %v316
    %v318 = vpop.f32.mrb[0].mxu0
    %319 = vdwg.mxu0
    %v321 = vsel %vm91, %v70, 0
    %v324 = vsel %vm91, %v78, 0
    %326 = vmatprep.subr.mxu0 0.0
    %327 = vmatpush1.xpose.msra.mxu0 %v324
    %328 = vmatprep.subr.mxu0 0.0
    %329 = vmatpush1.xpose.msra.mxu0 0.0
    %330 = vmatprep.subr.mxu0 0.0
    %331 = vmatpush1.xpose.msra.mxu0 0.0
    %332 = vmatprep.subr.mxu0 0.0
    %333 = vmatpush1.xpose.msra.mxu0 0.0
    %334 = vmatprep.subr.mxu0 0.0
    %335 = vmatpush1.xpose.msra.mxu0 0.0
    %336 = vmatprep.subr.mxu0 0.0
    %337 = vmatpush1.xpose.msra.mxu0 0.0
    %338 = vmatprep.subr.mxu0 0.0
    %339 = vmatpush1.xpose.msra.mxu0 0.0
    %340 = vmatprep.subr.mxu0 0.0
    %341 = vmatpush1.xpose.msra.mxu0 0.0
    %342 = vmatprep.subr.mxu0 0.0
    %343 = vmatpush1.xpose.msra.mxu0 0.0
    %344 = vmatprep.subr.mxu0 0.0
    %345 = vmatpush1.xpose.msra.mxu0 0.0
    %346 = vmatprep.subr.mxu0 0.0
    %347 = vmatpush1.xpose.msra.mxu0 0.0
    %348 = vmatprep.subr.mxu0 0.0
    %349 = vmatpush1.xpose.msra.mxu0 0.0
    %350 = vmatprep.subr.mxu0 0.0
    %351 = vmatpush1.xpose.msra.mxu0 0.0
    %352 = vmatprep.subr.mxu0 0.0
    %353 = vmatpush1.xpose.msra.mxu0 0.0
    %354 = vmatprep.subr.mxu0 0.0
    %355 = vmatpush1.xpose.msra.mxu0 0.0
    %356 = vmatprep.subr.mxu0 0.0
    %357 = vmatpush1.xpose.msra.mxu0 0.0
    %358 = vmatprep.subr.mxu0 0.0
    %359 = vmatpush1.xpose.msra.mxu0 0.0
    %360 = vmatprep.subr.mxu0 0.0
    %361 = vmatpush1.xpose.msra.mxu0 0.0
    %362 = vmatprep.subr.mxu0 0.0
    %363 = vmatpush1.xpose.msra.mxu0 0.0
    %364 = vmatprep.subr.mxu0 0.0
    %365 = vmatpush1.xpose.msra.mxu0 0.0
    %366 = vmatprep.subr.mxu0 0.0
    %367 = vmatpush1.xpose.msra.mxu0 0.0
    %368 = vmatprep.subr.mxu0 0.0
    %369 = vmatpush1.xpose.msra.mxu0 0.0
    %370 = vmatprep.subr.mxu0 0.0
    %371 = vmatpush1.xpose.msra.mxu0 0.0
    %372 = vmatprep.subr.mxu0 0.0
    %373 = vmatpush1.xpose.msra.mxu0 0.0
    %374 = vmatprep.subr.mxu0 0.0
    %375 = vmatpush1.xpose.msra.mxu0 0.0
    %376 = vmatprep.subr.mxu0 0.0
    %377 = vmatpush1.xpose.msra.mxu0 0.0
    %378 = vmatprep.subr.mxu0 0.0
    %379 = vmatpush1.xpose.msra.mxu0 0.0
    %380 = vmatprep.subr.mxu0 0.0
    %381 = vmatpush1.xpose.msra.mxu0 0.0
    %382 = vmatprep.subr.mxu0 0.0
    %383 = vmatpush1.xpose.msra.mxu0 0.0
    %384 = vmatprep.subr.mxu0 0.0
    %385 = vmatpush1.xpose.msra.mxu0 0.0
    %386 = vmatprep.subr.mxu0 0.0
    %387 = vmatpush1.xpose.msra.mxu0 0.0
    %388 = vmatprep.subr.mxu0 0.0
    %389 = vmatpush1.xpose.msra.mxu0 0.0
    %390 = vmatprep.mubr.f32.mxu0 0.0
    %391 = vmatmul.mubr.f32.gmra.mrb[0].mxu0 %v321
    %v392 = vpop.f32.mrb[0].mxu0
    %v393 = vadd.f32 0.0, %v392
    %v394 = vpop.f32.mrb[0].mxu0
    %395 = vdwg.mxu0
    %v397 = vsel %vm91, %v71, 0
    %v400 = vsel %vm91, %v79, 0
    %402 = vmatprep.subr.mxu0 0.0
    %403 = vmatpush1.xpose.msra.mxu0 %v400
    %404 = vmatprep.subr.mxu0 0.0
    %405 = vmatpush1.xpose.msra.mxu0 0.0
    %406 = vmatprep.subr.mxu0 0.0
    %407 = vmatpush1.xpose.msra.mxu0 0.0
    %408 = vmatprep.subr.mxu0 0.0
    %409 = vmatpush1.xpose.msra.mxu0 0.0
    %410 = vmatprep.subr.mxu0 0.0
    %411 = vmatpush1.xpose.msra.mxu0 0.0
    %412 = vmatprep.subr.mxu0 0.0
    %413 = vmatpush1.xpose.msra.mxu0 0.0
    %414 = vmatprep.subr.mxu0 0.0
    %415 = vmatpush1.xpose.msra.mxu0 0.0
    %416 = vmatprep.subr.mxu0 0.0
    %417 = vmatpush1.xpose.msra.mxu0 0.0
    %418 = vmatprep.subr.mxu0 0.0
    %419 = vmatpush1.xpose.msra.mxu0 0.0
    %420 = vmatprep.subr.mxu0 0.0
    %421 = vmatpush1.xpose.msra.mxu0 0.0
    %422 = vmatprep.subr.mxu0 0.0
    %423 = vmatpush1.xpose.msra.mxu0 0.0
    %424 = vmatprep.subr.mxu0 0.0
    %425 = vmatpush1.xpose.msra.mxu0 0.0
    %426 = vmatprep.subr.mxu0 0.0
    %427 = vmatpush1.xpose.msra.mxu0 0.0
    %428 = vmatprep.subr.mxu0 0.0
    %429 = vmatpush1.xpose.msra.mxu0 0.0
    %430 = vmatprep.subr.mxu0 0.0
    %431 = vmatpush1.xpose.msra.mxu0 0.0
    %432 = vmatprep.subr.mxu0 0.0
    %433 = vmatpush1.xpose.msra.mxu0 0.0
    %434 = vmatprep.subr.mxu0 0.0
    %435 = vmatpush1.xpose.msra.mxu0 0.0
    %436 = vmatprep.subr.mxu0 0.0
    %437 = vmatpush1.xpose.msra.mxu0 0.0
    %438 = vmatprep.subr.mxu0 0.0
    %439 = vmatpush1.xpose.msra.mxu0 0.0
    %440 = vmatprep.subr.mxu0 0.0
    %441 = vmatpush1.xpose.msra.mxu0 0.0
    %442 = vmatprep.subr.mxu0 0.0
    %443 = vmatpush1.xpose.msra.mxu0 0.0
    %444 = vmatprep.subr.mxu0 0.0
    %445 = vmatpush1.xpose.msra.mxu0 0.0
    %446 = vmatprep.subr.mxu0 0.0
    %447 = vmatpush1.xpose.msra.mxu0 0.0
    %448 = vmatprep.subr.mxu0 0.0
    %449 = vmatpush1.xpose.msra.mxu0 0.0
    %450 = vmatprep.subr.mxu0 0.0
    %451 = vmatpush1.xpose.msra.mxu0 0.0
    %452 = vmatprep.subr.mxu0 0.0
    %453 = vmatpush1.xpose.msra.mxu0 0.0
    %454 = vmatprep.subr.mxu0 0.0
    %455 = vmatpush1.xpose.msra.mxu0 0.0
    %456 = vmatprep.subr.mxu0 0.0
    %457 = vmatpush1.xpose.msra.mxu0 0.0
    %458 = vmatprep.subr.mxu0 0.0
    %459 = vmatpush1.xpose.msra.mxu0 0.0
    %460 = vmatprep.subr.mxu0 0.0
    %461 = vmatpush1.xpose.msra.mxu0 0.0
    %462 = vmatprep.subr.mxu0 0.0
    %463 = vmatpush1.xpose.msra.mxu0 0.0
    %464 = vmatprep.subr.mxu0 0.0
    %465 = vmatpush1.xpose.msra.mxu0 0.0
    %466 = vmatprep.mubr.f32.mxu0 0.0
    %467 = vmatmul.mubr.f32.gmra.mrb[0].mxu0 %v397
    %v468 = vpop.f32.mrb[0].mxu0
    %v469 = vadd.f32 0.0, %v468
    %v470 = vpop.f32.mrb[0].mxu0
    %471 = vdwg.mxu0
    %v473 = vsel %vm91, %v72, 0
    %v476 = vsel %vm91, %v80, 0
    %478 = vmatprep.subr.mxu0 0.0
    %479 = vmatpush1.xpose.msra.mxu0 %v476
    %480 = vmatprep.subr.mxu0 0.0
    %481 = vmatpush1.xpose.msra.mxu0 0.0
    %482 = vmatprep.subr.mxu0 0.0
    %483 = vmatpush1.xpose.msra.mxu0 0.0
    %484 = vmatprep.subr.mxu0 0.0
    %485 = vmatpush1.xpose.msra.mxu0 0.0
    %486 = vmatprep.subr.mxu0 0.0
    %487 = vmatpush1.xpose.msra.mxu0 0.0
    %488 = vmatprep.subr.mxu0 0.0
    %489 = vmatpush1.xpose.msra.mxu0 0.0
    %490 = vmatprep.subr.mxu0 0.0
    %491 = vmatpush1.xpose.msra.mxu0 0.0
    %492 = vmatprep.subr.mxu0 0.0
    %493 = vmatpush1.xpose.msra.mxu0 0.0
    %494 = vmatprep.subr.mxu0 0.0
    %495 = vmatpush1.xpose.msra.mxu0 0.0
    %496 = vmatprep.subr.mxu0 0.0
    %497 = vmatpush1.xpose.msra.mxu0 0.0
    %498 = vmatprep.subr.mxu0 0.0
    %499 = vmatpush1.xpose.msra.mxu0 0.0
    %500 = vmatprep.subr.mxu0 0.0
    %501 = vmatpush1.xpose.msra.mxu0 0.0
    %502 = vmatprep.subr.mxu0 0.0
    %503 = vmatpush1.xpose.msra.mxu0 0.0
    %504 = vmatprep.subr.mxu0 0.0
    %505 = vmatpush1.xpose.msra.mxu0 0.0
    %506 = vmatprep.subr.mxu0 0.0
    %507 = vmatpush1.xpose.msra.mxu0 0.0
    %508 = vmatprep.subr.mxu0 0.0
    %509 = vmatpush1.xpose.msra.mxu0 0.0
    %510 = vmatprep.subr.mxu0 0.0
    %511 = vmatpush1.xpose.msra.mxu0 0.0
    %512 = vmatprep.subr.mxu0 0.0
    %513 = vmatpush1.xpose.msra.mxu0 0.0
    %514 = vmatprep.subr.mxu0 0.0
    %515 = vmatpush1.xpose.msra.mxu0 0.0
    %516 = vmatprep.subr.mxu0 0.0
    %517 = vmatpush1.xpose.msra.mxu0 0.0
    %518 = vmatprep.subr.mxu0 0.0
    %519 = vmatpush1.xpose.msra.mxu0 0.0
    %520 = vmatprep.subr.mxu0 0.0
    %521 = vmatpush1.xpose.msra.mxu0 0.0
    %522 = vmatprep.subr.mxu0 0.0
    %523 = vmatpush1.xpose.msra.mxu0 0.0
    %524 = vmatprep.subr.mxu0 0.0
    %525 = vmatpush1.xpose.msra.mxu0 0.0
    %526 = vmatprep.subr.mxu0 0.0
    %527 = vmatpush1.xpose.msra.mxu0 0.0
    %528 = vmatprep.subr.mxu0 0.0
    %529 = vmatpush1.xpose.msra.mxu0 0.0
    %530 = vmatprep.subr.mxu0 0.0
    %531 = vmatpush1.xpose.msra.mxu0 0.0
    %532 = vmatprep.subr.mxu0 0.0
    %533 = vmatpush1.xpose.msra.mxu0 0.0
    %534 = vmatprep.subr.mxu0 0.0
    %535 = vmatpush1.xpose.msra.mxu0 0.0
    %536 = vmatprep.subr.mxu0 0.0
    %537 = vmatpush1.xpose.msra.mxu0 0.0
    %538 = vmatprep.subr.mxu0 0.0
    %539 = vmatpush1.xpose.msra.mxu0 0.0
    %540 = vmatprep.subr.mxu0 0.0
    %541 = vmatpush1.xpose.msra.mxu0 0.0
    %542 = vmatprep.mubr.f32.mxu0 0.0
    %543 = vmatmul.mubr.f32.gmra.mrb[0].mxu0 %v473
    %v544 = vpop.f32.mrb[0].mxu0
    %v545 = vadd.f32 0.0, %v544
    %v546 = vpop.f32.mrb[0].mxu0
    %547 = vdwg.mxu0
    %v549 = vsel %vm91, %v73, 0
    %v552 = vsel %vm91, %v81, 0
    %554 = vmatprep.subr.mxu0 0.0
    %555 = vmatpush1.xpose.msra.mxu0 %v552
    %556 = vmatprep.subr.mxu0 0.0
    %557 = vmatpush1.xpose.msra.mxu0 0.0
    %558 = vmatprep.subr.mxu0 0.0
    %559 = vmatpush1.xpose.msra.mxu0 0.0
    %560 = vmatprep.subr.mxu0 0.0
    %561 = vmatpush1.xpose.msra.mxu0 0.0
    %562 = vmatprep.subr.mxu0 0.0
    %563 = vmatpush1.xpose.msra.mxu0 0.0
    %564 = vmatprep.subr.mxu0 0.0
    %565 = vmatpush1.xpose.msra.mxu0 0.0
    %566 = vmatprep.subr.mxu0 0.0
    %567 = vmatpush1.xpose.msra.mxu0 0.0
    %568 = vmatprep.subr.mxu0 0.0
    %569 = vmatpush1.xpose.msra.mxu0 0.0
    %570 = vmatprep.subr.mxu0 0.0
    %571 = vmatpush1.xpose.msra.mxu0 0.0
    %572 = vmatprep.subr.mxu0 0.0
    %573 = vmatpush1.xpose.msra.mxu0 0.0
    %574 = vmatprep.subr.mxu0 0.0
    %575 = vmatpush1.xpose.msra.mxu0 0.0
    %576 = vmatprep.subr.mxu0 0.0
    %577 = vmatpush1.xpose.msra.mxu0 0.0
    %578 = vmatprep.subr.mxu0 0.0
    %579 = vmatpush1.xpose.msra.mxu0 0.0
    %580 = vmatprep.subr.mxu0 0.0
    %581 = vmatpush1.xpose.msra.mxu0 0.0
    %582 = vmatprep.subr.mxu0 0.0
    %583 = vmatpush1.xpose.msra.mxu0 0.0
    %584 = vmatprep.subr.mxu0 0.0
    %585 = vmatpush1.xpose.msra.mxu0 0.0
    %586 = vmatprep.subr.mxu0 0.0
    %587 = vmatpush1.xpose.msra.mxu0 0.0
    %588 = vmatprep.subr.mxu0 0.0
    %589 = vmatpush1.xpose.msra.mxu0 0.0
    %590 = vmatprep.subr.mxu0 0.0
    %591 = vmatpush1.xpose.msra.mxu0 0.0
    %592 = vmatprep.subr.mxu0 0.0
    %593 = vmatpush1.xpose.msra.mxu0 0.0
    %594 = vmatprep.subr.mxu0 0.0
    %595 = vmatpush1.xpose.msra.mxu0 0.0
    %596 = vmatprep.subr.mxu0 0.0
    %597 = vmatpush1.xpose.msra.mxu0 0.0
    %598 = vmatprep.subr.mxu0 0.0
    %599 = vmatpush1.xpose.msra.mxu0 0.0
    %600 = vmatprep.subr.mxu0 0.0
    %601 = vmatpush1.xpose.msra.mxu0 0.0
    %602 = vmatprep.subr.mxu0 0.0
    %603 = vmatpush1.xpose.msra.mxu0 0.0
    %604 = vmatprep.subr.mxu0 0.0
    %605 = vmatpush1.xpose.msra.mxu0 0.0
    %606 = vmatprep.subr.mxu0 0.0
    %607 = vmatpush1.xpose.msra.mxu0 0.0
    %608 = vmatprep.subr.mxu0 0.0
    %609 = vmatpush1.xpose.msra.mxu0 0.0
    %610 = vmatprep.subr.mxu0 0.0
    %611 = vmatpush1.xpose.msra.mxu0 0.0
    %612 = vmatprep.subr.mxu0 0.0
    %613 = vmatpush1.xpose.msra.mxu0 0.0
    %614 = vmatprep.subr.mxu0 0.0
    %615 = vmatpush1.xpose.msra.mxu0 0.0
    %616 = vmatprep.subr.mxu0 0.0
    %617 = vmatpush1.xpose.msra.mxu0 0.0
    %618 = vmatprep.mubr.f32.mxu0 0.0
    %619 = vmatmul.mubr.f32.gmra.mrb[0].mxu0 %v549
    %v620 = vpop.f32.mrb[0].mxu0
    %v621 = vadd.f32 0.0, %v620
    %v622 = vpop.f32.mrb[0].mxu0
    %623 = vdwg.mxu0
    %v625 = vsel %vm91, %v74, 0
    %v628 = vsel %vm91, %v82, 0
    %630 = vmatprep.subr.mxu0 0.0
    %631 = vmatpush1.xpose.msra.mxu0 %v628
    %632 = vmatprep.subr.mxu0 0.0
    %633 = vmatpush1.xpose.msra.mxu0 0.0
    %634 = vmatprep.subr.mxu0 0.0
    %635 = vmatpush1.xpose.msra.mxu0 0.0
    %636 = vmatprep.subr.mxu0 0.0
    %637 = vmatpush1.xpose.msra.mxu0 0.0
    %638 = vmatprep.subr.mxu0 0.0
    %639 = vmatpush1.xpose.msra.mxu0 0.0
    %640 = vmatprep.subr.mxu0 0.0
    %641 = vmatpush1.xpose.msra.mxu0 0.0
    %642 = vmatprep.subr.mxu0 0.0
    %643 = vmatpush1.xpose.msra.mxu0 0.0
    %644 = vmatprep.subr.mxu0 0.0
    %645 = vmatpush1.xpose.msra.mxu0 0.0
    %646 = vmatprep.subr.mxu0 0.0
    %647 = vmatpush1.xpose.msra.mxu0 0.0
    %648 = vmatprep.subr.mxu0 0.0
    %649 = vmatpush1.xpose.msra.mxu0 0.0
    %650 = vmatprep.subr.mxu0 0.0
    %651 = vmatpush1.xpose.msra.mxu0 0.0
    %652 = vmatprep.subr.mxu0 0.0
    %653 = vmatpush1.xpose.msra.mxu0 0.0
    %654 = vmatprep.subr.mxu0 0.0
    %655 = vmatpush1.xpose.msra.mxu0 0.0
    %656 = vmatprep.subr.mxu0 0.0
    %657 = vmatpush1.xpose.msra.mxu0 0.0
    %658 = vmatprep.subr.mxu0 0.0
    %659 = vmatpush1.xpose.msra.mxu0 0.0
    %660 = vmatprep.subr.mxu0 0.0
    %661 = vmatpush1.xpose.msra.mxu0 0.0
    %662 = vmatprep.subr.mxu0 0.0
    %663 = vmatpush1.xpose.msra.mxu0 0.0
    %664 = vmatprep.subr.mxu0 0.0
    %665 = vmatpush1.xpose.msra.mxu0 0.0
    %666 = vmatprep.subr.mxu0 0.0
    %667 = vmatpush1.xpose.msra.mxu0 0.0
    %668 = vmatprep.subr.mxu0 0.0
    %669 = vmatpush1.xpose.msra.mxu0 0.0
    %670 = vmatprep.subr.mxu0 0.0
    %671 = vmatpush1.xpose.msra.mxu0 0.0
    %672 = vmatprep.subr.mxu0 0.0
    %673 = vmatpush1.xpose.msra.mxu0 0.0
    %674 = vmatprep.subr.mxu0 0.0
    %675 = vmatpush1.xpose.msra.mxu0 0.0
    %676 = vmatprep.subr.mxu0 0.0
    %677 = vmatpush1.xpose.msra.mxu0 0.0
    %678 = vmatprep.subr.mxu0 0.0
    %679 = vmatpush1.xpose.msra.mxu0 0.0
    %680 = vmatprep.subr.mxu0 0.0
    %681 = vmatpush1.xpose.msra.mxu0 0.0
    %682 = vmatprep.subr.mxu0 0.0
    %683 = vmatpush1.xpose.msra.mxu0 0.0
    %684 = vmatprep.subr.mxu0 0.0
    %685 = vmatpush1.xpose.msra.mxu0 0.0
    %686 = vmatprep.subr.mxu0 0.0
    %687 = vmatpush1.xpose.msra.mxu0 0.0
    %688 = vmatprep.subr.mxu0 0.0
    %689 = vmatpush1.xpose.msra.mxu0 0.0
    %690 = vmatprep.subr.mxu0 0.0
    %691 = vmatpush1.xpose.msra.mxu0 0.0
    %692 = vmatprep.subr.mxu0 0.0
    %693 = vmatpush1.xpose.msra.mxu0 0.0
    %694 = vmatprep.mubr.f32.mxu0 0.0
    %695 = vmatmul.mubr.f32.gmra.mrb[0].mxu0 %v625
    %v696 = vpop.f32.mrb[0].mxu0
    %v697 = vadd.f32 0.0, %v696
    %v698 = vpop.f32.mrb[0].mxu0
    %699 = vdwg.mxu0
    %vm700 = vcmask 64512
    %v701 = vsel %vm700, %v165, -inf
    %702 = vmax.xlane.f32.xlu0 %v701
    %v703 = vpop.xlane.xlu0 %702
    %v704 = vsel %vm700, %v241, -inf
    %705 = vmax.xlane.f32.xlu0 %v704
    %v706 = vpop.xlane.xlu0 %705
    %v707 = vsel %vm700, %v317, -inf
    %708 = vmax.xlane.f32.xlu0 %v707
    %v709 = vpop.xlane.xlu0 %708
    %v710 = vsel %vm700, %v393, -inf
    %711 = vmax.xlane.f32.xlu0 %v710
    %v712 = vpop.xlane.xlu0 %711
    %v713 = vsel %vm700, %v469, -inf
    %714 = vmax.xlane.f32.xlu0 %v713
    %v715 = vpop.xlane.xlu0 %714
    %v716 = vsel %vm700, %v545, -inf
    %717 = vmax.xlane.f32.xlu0 %v716
    %v718 = vpop.xlane.xlu0 %717
    %v719 = vsel %vm700, %v621, -inf
    %720 = vmax.xlane.f32.xlu0 %v719
    %v721 = vpop.xlane.xlu0 %720
    %v722 = vsel %vm700, %v697, -inf
    %723 = vmax.xlane.f32.xlu0 %v722
    %v724 = vpop.xlane.xlu0 %723
    %v725 = vsub.f32 %v165, %v703
    %v726 = vsub.f32 %v241, %v706
    %v727 = vsub.f32 %v317, %v709
    %v728 = vsub.f32 %v393, %v712
    %v729 = vsub.f32 %v469, %v715
    %v730 = vsub.f32 %v545, %v718
    %v731 = vsub.f32 %v621, %v721
    %v732 = vsub.f32 %v697, %v724
    %v733 = vmul.f32 %v725, 1.442695
    %v734 = vpow.pop %v733
    %v735 = vmul.f32 %v726, 1.442695
    %v736 = vpow.pop %v735
    %v737 = vmul.f32 %v727, 1.442695
    %v738 = vpow.pop %v737
    %v739 = vmul.f32 %v728, 1.442695
    %v740 = vpow.pop %v739
    %v741 = vmul.f32 %v729, 1.442695
    %v742 = vpow.pop %v741
    %v743 = vmul.f32 %v730, 1.442695
    %v744 = vpow.pop %v743
    %v745 = vmul.f32 %v731, 1.442695
    %v746 = vpow.pop %v745
    %v747 = vmul.f32 %v732, 1.442695
    %v748 = vpow.pop %v747
    %v749 = vsel %vm700, %v734, 0.0
    %750 = vadd.xlane.f32.xlu0 %v749
    %v751 = vpop.xlane.xlu0 %750
    %v752 = vsel %vm700, %v736, 0.0
    %753 = vadd.xlane.f32.xlu0 %v752
    %v754 = vpop.xlane.xlu0 %753
    %v755 = vsel %vm700, %v738, 0.0
    %756 = vadd.xlane.f32.xlu0 %v755
    %v757 = vpop.xlane.xlu0 %756
    %v758 = vsel %vm700, %v740, 0.0
    %759 = vadd.xlane.f32.xlu0 %v758
    %v760 = vpop.xlane.xlu0 %759
    %v761 = vsel %vm700, %v742, 0.0
    %762 = vadd.xlane.f32.xlu0 %v761
    %v763 = vpop.xlane.xlu0 %762
    %v764 = vsel %vm700, %v744, 0.0
    %765 = vadd.xlane.f32.xlu0 %v764
    %v766 = vpop.xlane.xlu0 %765
    %v767 = vsel %vm700, %v746, 0.0
    %768 = vadd.xlane.f32.xlu0 %v767
    %v769 = vpop.xlane.xlu0 %768
    %v770 = vsel %vm700, %v748, 0.0
    %771 = vadd.xlane.f32.xlu0 %v770
    %v772 = vpop.xlane.xlu0 %771
    %v773 = vrcp.pop %v751
    %v774 = vrcp.pop %v754
    %v775 = vrcp.pop %v757
    %v776 = vrcp.pop %v760
    %v777 = vrcp.pop %v763
    %v778 = vrcp.pop %v766
    %v779 = vrcp.pop %v769
    %v780 = vrcp.pop %v772
    %v781 = vmul.f32 %v751, %v773
    %v782 = vmul.f32 %v754, %v774
    %v783 = vmul.f32 %v757, %v775
    %v784 = vmul.f32 %v760, %v776
    %v785 = vmul.f32 %v763, %v777
    %v786 = vmul.f32 %v766, %v778
    %v787 = vmul.f32 %v769, %v779
    %v788 = vmul.f32 %v772, %v780
    %v789 = vsub.f32 2.0, %v781
    %v790 = vsub.f32 2.0, %v782
    %v791 = vsub.f32 2.0, %v783
    %v792 = vsub.f32 2.0, %v784
    %v793 = vsub.f32 2.0, %v785
    %v794 = vsub.f32 2.0, %v786
    %v795 = vsub.f32 2.0, %v787
    %v796 = vsub.f32 2.0, %v788
    %v797 = vmul.f32 %v773, %v789
    %v798 = vmul.f32 %v774, %v790
    %v799 = vmul.f32 %v775, %v791
    %v800 = vmul.f32 %v776, %v792
    %v801 = vmul.f32 %v777, %v793
    %v802 = vmul.f32 %v778, %v794
    %v803 = vmul.f32 %v779, %v795
    %v804 = vmul.f32 %v780, %v796
    %v805 = vmul.f32 %v734, %v797
    %v806 = vmul.f32 %v736, %v798
    %v807 = vmul.f32 %v738, %v799
    %v808 = vmul.f32 %v740, %v800
    %v809 = vmul.f32 %v742, %v801
    %v810 = vmul.f32 %v744, %v802
    %v811 = vmul.f32 %v746, %v803
    %v812 = vmul.f32 %v748, %v804
    %v814 = vsel %vm700, %v805, 0
    %816 = vmatprep.subr.mxu0 0.0
    %817 = vmatpush1.msra.mxu0 %v83
    %818 = vmatprep.subr.mxu0 0.0
    %819 = vmatpush1.msra.mxu0 0.0
    %820 = vmatprep.subr.mxu0 0.0
    %821 = vmatpush1.msra.mxu0 0.0
    %822 = vmatprep.subr.mxu0 0.0
    %823 = vmatpush1.msra.mxu0 0.0
    %824 = vmatprep.subr.mxu0 0.0
    %825 = vmatpush1.msra.mxu0 0.0
    %826 = vmatprep.subr.mxu0 0.0
    %827 = vmatpush1.msra.mxu0 0.0
    %828 = vmatprep.subr.mxu0 0.0
    %829 = vmatpush1.msra.mxu0 0.0
    %830 = vmatprep.subr.mxu0 0.0
    %831 = vmatpush1.msra.mxu0 0.0
    %832 = vmatprep.subr.mxu0 0.0
    %833 = vmatpush1.msra.mxu0 0.0
    %834 = vmatprep.subr.mxu0 0.0
    %835 = vmatpush1.msra.mxu0 0.0
    %836 = vmatprep.subr.mxu0 0.0
    %837 = vmatpush1.msra.mxu0 0.0
    %838 = vmatprep.subr.mxu0 0.0
    %839 = vmatpush1.msra.mxu0 0.0
    %840 = vmatprep.subr.mxu0 0.0
    %841 = vmatpush1.msra.mxu0 0.0
    %842 = vmatprep.subr.mxu0 0.0
    %843 = vmatpush1.msra.mxu0 0.0
    %844 = vmatprep.subr.mxu0 0.0
    %845 = vmatpush1.msra.mxu0 0.0
    %846 = vmatprep.subr.mxu0 0.0
    %847 = vmatpush1.msra.mxu0 0.0
    %848 = vmatprep.subr.mxu0 0.0
    %849 = vmatpush1.msra.mxu0 0.0
    %850 = vmatprep.subr.mxu0 0.0
    %851 = vmatpush1.msra.mxu0 0.0
    %852 = vmatprep.subr.mxu0 0.0
    %853 = vmatpush1.msra.mxu0 0.0
    %854 = vmatprep.subr.mxu0 0.0
    %855 = vmatpush1.msra.mxu0 0.0
    %856 = vmatprep.subr.mxu0 0.0
    %857 = vmatpush1.msra.mxu0 0.0
    %858 = vmatprep.subr.mxu0 0.0
    %859 = vmatpush1.msra.mxu0 0.0
    %860 = vmatprep.subr.mxu0 0.0
    %861 = vmatpush1.msra.mxu0 0.0
    %862 = vmatprep.subr.mxu0 0.0
    %863 = vmatpush1.msra.mxu0 0.0
    %864 = vmatprep.subr.mxu0 0.0
    %865 = vmatpush1.msra.mxu0 0.0
    %866 = vmatprep.subr.mxu0 0.0
    %867 = vmatpush1.msra.mxu0 0.0
    %868 = vmatprep.subr.mxu0 0.0
    %869 = vmatpush1.msra.mxu0 0.0
    %870 = vmatprep.subr.mxu0 0.0
    %871 = vmatpush1.msra.mxu0 0.0
    %872 = vmatprep.subr.mxu0 0.0
    %873 = vmatpush1.msra.mxu0 0.0
    %874 = vmatprep.subr.mxu0 0.0
    %875 = vmatpush1.msra.mxu0 0.0
    %876 = vmatprep.subr.mxu0 0.0
    %877 = vmatpush1.msra.mxu0 0.0
    %878 = vmatprep.subr.mxu0 0.0
    %879 = vmatpush1.msra.mxu0 0.0
    %880 = vmatprep.mubr.f32.mxu0 0.0
    %881 = vmatmul.mubr.f32.gmra.mrb[0].mxu0 %v814
    %v882 = vpop.f32.mrb[0].mxu0
    %v883 = vadd.f32 0.0, %v882
    %v884 = vpop.f32.mrb[0].mxu0
    %885 = vdwg.mxu0
    %v887 = vsel %vm700, %v806, 0
    %889 = vmatprep.subr.mxu0 0.0
    %890 = vmatpush1.msra.mxu0 %v84
    %891 = vmatprep.subr.mxu0 0.0
    %892 = vmatpush1.msra.mxu0 0.0
    %893 = vmatprep.subr.mxu0 0.0
    %894 = vmatpush1.msra.mxu0 0.0
    %895 = vmatprep.subr.mxu0 0.0
    %896 = vmatpush1.msra.mxu0 0.0
    %897 = vmatprep.subr.mxu0 0.0
    %898 = vmatpush1.msra.mxu0 0.0
    %899 = vmatprep.subr.mxu0 0.0
    %900 = vmatpush1.msra.mxu0 0.0
    %901 = vmatprep.subr.mxu0 0.0
    %902 = vmatpush1.msra.mxu0 0.0
    %903 = vmatprep.subr.mxu0 0.0
    %904 = vmatpush1.msra.mxu0 0.0
    %905 = vmatprep.subr.mxu0 0.0
    %906 = vmatpush1.msra.mxu0 0.0
    %907 = vmatprep.subr.mxu0 0.0
    %908 = vmatpush1.msra.mxu0 0.0
    %909 = vmatprep.subr.mxu0 0.0
    %910 = vmatpush1.msra.mxu0 0.0
    %911 = vmatprep.subr.mxu0 0.0
    %912 = vmatpush1.msra.mxu0 0.0
    %913 = vmatprep.subr.mxu0 0.0
    %914 = vmatpush1.msra.mxu0 0.0
    %915 = vmatprep.subr.mxu0 0.0
    %916 = vmatpush1.msra.mxu0 0.0
    %917 = vmatprep.subr.mxu0 0.0
    %918 = vmatpush1.msra.mxu0 0.0
    %919 = vmatprep.subr.mxu0 0.0
    %920 = vmatpush1.msra.mxu0 0.0
    %921 = vmatprep.subr.mxu0 0.0
    %922 = vmatpush1.msra.mxu0 0.0
    %923 = vmatprep.subr.mxu0 0.0
    %924 = vmatpush1.msra.mxu0 0.0
    %925 = vmatprep.subr.mxu0 0.0
    %926 = vmatpush1.msra.mxu0 0.0
    %927 = vmatprep.subr.mxu0 0.0
    %928 = vmatpush1.msra.mxu0 0.0
    %929 = vmatprep.subr.mxu0 0.0
    %930 = vmatpush1.msra.mxu0 0.0
    %931 = vmatprep.subr.mxu0 0.0
    %932 = vmatpush1.msra.mxu0 0.0
    %933 = vmatprep.subr.mxu0 0.0
    %934 = vmatpush1.msra.mxu0 0.0
    %935 = vmatprep.subr.mxu0 0.0
    %936 = vmatpush1.msra.mxu0 0.0
    %937 = vmatprep.subr.mxu0 0.0
    %938 = vmatpush1.msra.mxu0 0.0
    %939 = vmatprep.subr.mxu0 0.0
    %940 = vmatpush1.msra.mxu0 0.0
    %941 = vmatprep.subr.mxu0 0.0
    %942 = vmatpush1.msra.mxu0 0.0
    %943 = vmatprep.subr.mxu0 0.0
    %944 = vmatpush1.msra.mxu0 0.0
    %945 = vmatprep.subr.mxu0 0.0
    %946 = vmatpush1.msra.mxu0 0.0
    %947 = vmatprep.subr.mxu0 0.0
    %948 = vmatpush1.msra.mxu0 0.0
    %949 = vmatprep.subr.mxu0 0.0
    %950 = vmatpush1.msra.mxu0 0.0
    %951 = vmatprep.subr.mxu0 0.0
    %952 = vmatpush1.msra.mxu0 0.0
    %953 = vmatprep.mubr.f32.mxu0 0.0
    %954 = vmatmul.mubr.f32.gmra.mrb[0].mxu0 %v887
    %v955 = vpop.f32.mrb[0].mxu0
    %v956 = vadd.f32 0.0, %v955
    %v957 = vpop.f32.mrb[0].mxu0
    %958 = vdwg.mxu0
    %v960 = vsel %vm700, %v807, 0
    %962 = vmatprep.subr.mxu0 0.0
    %963 = vmatpush1.msra.mxu0 %v85
    %964 = vmatprep.subr.mxu0 0.0
    %965 = vmatpush1.msra.mxu0 0.0
    %966 = vmatprep.subr.mxu0 0.0
    %967 = vmatpush1.msra.mxu0 0.0
    %968 = vmatprep.subr.mxu0 0.0
    %969 = vmatpush1.msra.mxu0 0.0
    %970 = vmatprep.subr.mxu0 0.0
    %971 = vmatpush1.msra.mxu0 0.0
    %972 = vmatprep.subr.mxu0 0.0
    %973 = vmatpush1.msra.mxu0 0.0
    %974 = vmatprep.subr.mxu0 0.0
    %975 = vmatpush1.msra.mxu0 0.0
    %976 = vmatprep.subr.mxu0 0.0
    %977 = vmatpush1.msra.mxu0 0.0
    %978 = vmatprep.subr.mxu0 0.0
    %979 = vmatpush1.msra.mxu0 0.0
    %980 = vmatprep.subr.mxu0 0.0
    %981 = vmatpush1.msra.mxu0 0.0
    %982 = vmatprep.subr.mxu0 0.0
    %983 = vmatpush1.msra.mxu0 0.0
    %984 = vmatprep.subr.mxu0 0.0
    %985 = vmatpush1.msra.mxu0 0.0
    %986 = vmatprep.subr.mxu0 0.0
    %987 = vmatpush1.msra.mxu0 0.0
    %988 = vmatprep.subr.mxu0 0.0
    %989 = vmatpush1.msra.mxu0 0.0
    %990 = vmatprep.subr.mxu0 0.0
    %991 = vmatpush1.msra.mxu0 0.0
    %992 = vmatprep.subr.mxu0 0.0
    %993 = vmatpush1.msra.mxu0 0.0
    %994 = vmatprep.subr.mxu0 0.0
    %995 = vmatpush1.msra.mxu0 0.0
    %996 = vmatprep.subr.mxu0 0.0
    %997 = vmatpush1.msra.mxu0 0.0
    %998 = vmatprep.subr.mxu0 0.0
    %999 = vmatpush1.msra.mxu0 0.0
    %1000 = vmatprep.subr.mxu0 0.0
    %1001 = vmatpush1.msra.mxu0 0.0
    %1002 = vmatprep.subr.mxu0 0.0
    %1003 = vmatpush1.msra.mxu0 0.0
    %1004 = vmatprep.subr.mxu0 0.0
    %1005 = vmatpush1.msra.mxu0 0.0
    %1006 = vmatprep.subr.mxu0 0.0
    %1007 = vmatpush1.msra.mxu0 0.0
    %1008 = vmatprep.subr.mxu0 0.0
    %1009 = vmatpush1.msra.mxu0 0.0
    %1010 = vmatprep.subr.mxu0 0.0
    %1011 = vmatpush1.msra.mxu0 0.0
    %1012 = vmatprep.subr.mxu0 0.0
    %1013 = vmatpush1.msra.mxu0 0.0
    %1014 = vmatprep.subr.mxu0 0.0
    %1015 = vmatpush1.msra.mxu0 0.0
    %1016 = vmatprep.subr.mxu0 0.0
    %1017 = vmatpush1.msra.mxu0 0.0
    %1018 = vmatprep.subr.mxu0 0.0
    %1019 = vmatpush1.msra.mxu0 0.0
    %1020 = vmatprep.subr.mxu0 0.0
    %1021 = vmatpush1.msra.mxu0 0.0
    %1022 = vmatprep.subr.mxu0 0.0
    %1023 = vmatpush1.msra.mxu0 0.0
    %1024 = vmatprep.subr.mxu0 0.0
    %1025 = vmatpush1.msra.mxu0 0.0
    %1026 = vmatprep.mubr.f32.mxu0 0.0
    %1027 = vmatmul.mubr.f32.gmra.mrb[0].mxu0 %v960
    %v1028 = vpop.f32.mrb[0].mxu0
    %v1029 = vadd.f32 0.0, %v1028
    %v1030 = vpop.f32.mrb[0].mxu0
    %1031 = vdwg.mxu0
    %v1033 = vsel %vm700, %v808, 0
    %1035 = vmatprep.subr.mxu0 0.0
    %1036 = vmatpush1.msra.mxu0 %v86
    %1037 = vmatprep.subr.mxu0 0.0
    %1038 = vmatpush1.msra.mxu0 0.0
    %1039 = vmatprep.subr.mxu0 0.0
    %1040 = vmatpush1.msra.mxu0 0.0
    %1041 = vmatprep.subr.mxu0 0.0
    %1042 = vmatpush1.msra.mxu0 0.0
    %1043 = vmatprep.subr.mxu0 0.0
    %1044 = vmatpush1.msra.mxu0 0.0
    %1045 = vmatprep.subr.mxu0 0.0
    %1046 = vmatpush1.msra.mxu0 0.0
    %1047 = vmatprep.subr.mxu0 0.0
    %1048 = vmatpush1.msra.mxu0 0.0
    %1049 = vmatprep.subr.mxu0 0.0
    %1050 = vmatpush1.msra.mxu0 0.0
    %1051 = vmatprep.subr.mxu0 0.0
    %1052 = vmatpush1.msra.mxu0 0.0
    %1053 = vmatprep.subr.mxu0 0.0
    %1054 = vmatpush1.msra.mxu0 0.0
    %1055 = vmatprep.subr.mxu0 0.0
    %1056 = vmatpush1.msra.mxu0 0.0
    %1057 = vmatprep.subr.mxu0 0.0
    %1058 = vmatpush1.msra.mxu0 0.0
    %1059 = vmatprep.subr.mxu0 0.0
    %1060 = vmatpush1.msra.mxu0 0.0
    %1061 = vmatprep.subr.mxu0 0.0
    %1062 = vmatpush1.msra.mxu0 0.0
    %1063 = vmatprep.subr.mxu0 0.0
    %1064 = vmatpush1.msra.mxu0 0.0
    %1065 = vmatprep.subr.mxu0 0.0
    %1066 = vmatpush1.msra.mxu0 0.0
    %1067 = vmatprep.subr.mxu0 0.0
    %1068 = vmatpush1.msra.mxu0 0.0
    %1069 = vmatprep.subr.mxu0 0.0
    %1070 = vmatpush1.msra.mxu0 0.0
    %1071 = vmatprep.subr.mxu0 0.0
    %1072 = vmatpush1.msra.mxu0 0.0
    %1073 = vmatprep.subr.mxu0 0.0
    %1074 = vmatpush1.msra.mxu0 0.0
    %1075 = vmatprep.subr.mxu0 0.0
    %1076 = vmatpush1.msra.mxu0 0.0
    %1077 = vmatprep.subr.mxu0 0.0
    %1078 = vmatpush1.msra.mxu0 0.0
    %1079 = vmatprep.subr.mxu0 0.0
    %1080 = vmatpush1.msra.mxu0 0.0
    %1081 = vmatprep.subr.mxu0 0.0
    %1082 = vmatpush1.msra.mxu0 0.0
    %1083 = vmatprep.subr.mxu0 0.0
    %1084 = vmatpush1.msra.mxu0 0.0
    %1085 = vmatprep.subr.mxu0 0.0
    %1086 = vmatpush1.msra.mxu0 0.0
    %1087 = vmatprep.subr.mxu0 0.0
    %1088 = vmatpush1.msra.mxu0 0.0
    %1089 = vmatprep.subr.mxu0 0.0
    %1090 = vmatpush1.msra.mxu0 0.0
    %1091 = vmatprep.subr.mxu0 0.0
    %1092 = vmatpush1.msra.mxu0 0.0
    %1093 = vmatprep.subr.mxu0 0.0
    %1094 = vmatpush1.msra.mxu0 0.0
    %1095 = vmatprep.subr.mxu0 0.0
    %1096 = vmatpush1.msra.mxu0 0.0
    %1097 = vmatprep.subr.mxu0 0.0
    %1098 = vmatpush1.msra.mxu0 0.0
    %1099 = vmatprep.mubr.f32.mxu0 0.0
    %1100 = vmatmul.mubr.f32.gmra.mrb[0].mxu0 %v1033
    %v1101 = vpop.f32.mrb[0].mxu0
    %v1102 = vadd.f32 0.0, %v1101
    %v1103 = vpop.f32.mrb[0].mxu0
    %1104 = vdwg.mxu0
    %v1106 = vsel %vm700, %v809, 0
    %1108 = vmatprep.subr.mxu0 0.0
    %1109 = vmatpush1.msra.mxu0 %v87
    %1110 = vmatprep.subr.mxu0 0.0
    %1111 = vmatpush1.msra.mxu0 0.0
    %1112 = vmatprep.subr.mxu0 0.0
    %1113 = vmatpush1.msra.mxu0 0.0
    %1114 = vmatprep.subr.mxu0 0.0
    %1115 = vmatpush1.msra.mxu0 0.0
    %1116 = vmatprep.subr.mxu0 0.0
    %1117 = vmatpush1.msra.mxu0 0.0
    %1118 = vmatprep.subr.mxu0 0.0
    %1119 = vmatpush1.msra.mxu0 0.0
    %1120 = vmatprep.subr.mxu0 0.0
    %1121 = vmatpush1.msra.mxu0 0.0
    %1122 = vmatprep.subr.mxu0 0.0
    %1123 = vmatpush1.msra.mxu0 0.0
    %1124 = vmatprep.subr.mxu0 0.0
    %1125 = vmatpush1.msra.mxu0 0.0
    %1126 = vmatprep.subr.mxu0 0.0
    %1127 = vmatpush1.msra.mxu0 0.0
    %1128 = vmatprep.subr.mxu0 0.0
    %1129 = vmatpush1.msra.mxu0 0.0
    %1130 = vmatprep.subr.mxu0 0.0
    %1131 = vmatpush1.msra.mxu0 0.0
    %1132 = vmatprep.subr.mxu0 0.0
    %1133 = vmatpush1.msra.mxu0 0.0
    %1134 = vmatprep.subr.mxu0 0.0
    %1135 = vmatpush1.msra.mxu0 0.0
    %1136 = vmatprep.subr.mxu0 0.0
    %1137 = vmatpush1.msra.mxu0 0.0
    %1138 = vmatprep.subr.mxu0 0.0
    %1139 = vmatpush1.msra.mxu0 0.0
    %1140 = vmatprep.subr.mxu0 0.0
    %1141 = vmatpush1.msra.mxu0 0.0
    %1142 = vmatprep.subr.mxu0 0.0
    %1143 = vmatpush1.msra.mxu0 0.0
    %1144 = vmatprep.subr.mxu0 0.0
    %1145 = vmatpush1.msra.mxu0 0.0
    %1146 = vmatprep.subr.mxu0 0.0
    %1147 = vmatpush1.msra.mxu0 0.0
    %1148 = vmatprep.subr.mxu0 0.0
    %1149 = vmatpush1.msra.mxu0 0.0
    %1150 = vmatprep.subr.mxu0 0.0
    %1151 = vmatpush1.msra.mxu0 0.0
    %1152 = vmatprep.subr.mxu0 0.0
    %1153 = vmatpush1.msra.mxu0 0.0
    %1154 = vmatprep.subr.mxu0 0.0
    %1155 = vmatpush1.msra.mxu0 0.0
    %1156 = vmatprep.subr.mxu0 0.0
    %1157 = vmatpush1.msra.mxu0 0.0
    %1158 = vmatprep.subr.mxu0 0.0
    %1159 = vmatpush1.msra.mxu0 0.0
    %1160 = vmatprep.subr.mxu0 0.0
    %1161 = vmatpush1.msra.mxu0 0.0
    %1162 = vmatprep.subr.mxu0 0.0
    %1163 = vmatpush1.msra.mxu0 0.0
    %1164 = vmatprep.subr.mxu0 0.0
    %1165 = vmatpush1.msra.mxu0 0.0
    %1166 = vmatprep.subr.mxu0 0.0
    %1167 = vmatpush1.msra.mxu0 0.0
    %1168 = vmatprep.subr.mxu0 0.0
    %1169 = vmatpush1.msra.mxu0 0.0
    %1170 = vmatprep.subr.mxu0 0.0
    %1171 = vmatpush1.msra.mxu0 0.0
    %1172 = vmatprep.mubr.f32.mxu0 0.0
    %1173 = vmatmul.mubr.f32.gmra.mrb[0].mxu0 %v1106
    %v1174 = vpop.f32.mrb[0].mxu0
    %v1175 = vadd.f32 0.0, %v1174
    %v1176 = vpop.f32.mrb[0].mxu0
    %1177 = vdwg.mxu0
    %v1179 = vsel %vm700, %v810, 0
    %1181 = vmatprep.subr.mxu0 0.0
    %1182 = vmatpush1.msra.mxu0 %v88
    %1183 = vmatprep.subr.mxu0 0.0
    %1184 = vmatpush1.msra.mxu0 0.0
    %1185 = vmatprep.subr.mxu0 0.0
    %1186 = vmatpush1.msra.mxu0 0.0
    %1187 = vmatprep.subr.mxu0 0.0
    %1188 = vmatpush1.msra.mxu0 0.0
    %1189 = vmatprep.subr.mxu0 0.0
    %1190 = vmatpush1.msra.mxu0 0.0
    %1191 = vmatprep.subr.mxu0 0.0
    %1192 = vmatpush1.msra.mxu0 0.0
    %1193 = vmatprep.subr.mxu0 0.0
    %1194 = vmatpush1.msra.mxu0 0.0
    %1195 = vmatprep.subr.mxu0 0.0
    %1196 = vmatpush1.msra.mxu0 0.0
    %1197 = vmatprep.subr.mxu0 0.0
    %1198 = vmatpush1.msra.mxu0 0.0
    %1199 = vmatprep.subr.mxu0 0.0
    %1200 = vmatpush1.msra.mxu0 0.0
    %1201 = vmatprep.subr.mxu0 0.0
    %1202 = vmatpush1.msra.mxu0 0.0
    %1203 = vmatprep.subr.mxu0 0.0
    %1204 = vmatpush1.msra.mxu0 0.0
    %1205 = vmatprep.subr.mxu0 0.0
    %1206 = vmatpush1.msra.mxu0 0.0
    %1207 = vmatprep.subr.mxu0 0.0
    %1208 = vmatpush1.msra.mxu0 0.0
    %1209 = vmatprep.subr.mxu0 0.0
    %1210 = vmatpush1.msra.mxu0 0.0
    %1211 = vmatprep.subr.mxu0 0.0
    %1212 = vmatpush1.msra.mxu0 0.0
    %1213 = vmatprep.subr.mxu0 0.0
    %1214 = vmatpush1.msra.mxu0 0.0
    %1215 = vmatprep.subr.mxu0 0.0
    %1216 = vmatpush1.msra.mxu0 0.0
    %1217 = vmatprep.subr.mxu0 0.0
    %1218 = vmatpush1.msra.mxu0 0.0
    %1219 = vmatprep.subr.mxu0 0.0
    %1220 = vmatpush1.msra.mxu0 0.0
    %1221 = vmatprep.subr.mxu0 0.0
    %1222 = vmatpush1.msra.mxu0 0.0
    %1223 = vmatprep.subr.mxu0 0.0
    %1224 = vmatpush1.msra.mxu0 0.0
    %1225 = vmatprep.subr.mxu0 0.0
    %1226 = vmatpush1.msra.mxu0 0.0
    %1227 = vmatprep.subr.mxu0 0.0
    %1228 = vmatpush1.msra.mxu0 0.0
    %1229 = vmatprep.subr.mxu0 0.0
    %1230 = vmatpush1.msra.mxu0 0.0
    %1231 = vmatprep.subr.mxu0 0.0
    %1232 = vmatpush1.msra.mxu0 0.0
    %1233 = vmatprep.subr.mxu0 0.0
    %1234 = vmatpush1.msra.mxu0 0.0
    %1235 = vmatprep.subr.mxu0 0.0
    %1236 = vmatpush1.msra.mxu0 0.0
    %1237 = vmatprep.subr.mxu0 0.0
    %1238 = vmatpush1.msra.mxu0 0.0
    %1239 = vmatprep.subr.mxu0 0.0
    %1240 = vmatpush1.msra.mxu0 0.0
    %1241 = vmatprep.subr.mxu0 0.0
    %1242 = vmatpush1.msra.mxu0 0.0
    %1243 = vmatprep.subr.mxu0 0.0
    %1244 = vmatpush1.msra.mxu0 0.0
    %1245 = vmatprep.mubr.f32.mxu0 0.0
    %1246 = vmatmul.mubr.f32.gmra.mrb[0].mxu0 %v1179
    %v1247 = vpop.f32.mrb[0].mxu0
    %v1248 = vadd.f32 0.0, %v1247
    %v1249 = vpop.f32.mrb[0].mxu0
    %1250 = vdwg.mxu0
    %v1252 = vsel %vm700, %v811, 0
    %1254 = vmatprep.subr.mxu0 0.0
    %1255 = vmatpush1.msra.mxu0 %v89
    %1256 = vmatprep.subr.mxu0 0.0
    %1257 = vmatpush1.msra.mxu0 0.0
    %1258 = vmatprep.subr.mxu0 0.0
    %1259 = vmatpush1.msra.mxu0 0.0
    %1260 = vmatprep.subr.mxu0 0.0
    %1261 = vmatpush1.msra.mxu0 0.0
    %1262 = vmatprep.subr.mxu0 0.0
    %1263 = vmatpush1.msra.mxu0 0.0
    %1264 = vmatprep.subr.mxu0 0.0
    %1265 = vmatpush1.msra.mxu0 0.0
    %1266 = vmatprep.subr.mxu0 0.0
    %1267 = vmatpush1.msra.mxu0 0.0
    %1268 = vmatprep.subr.mxu0 0.0
    %1269 = vmatpush1.msra.mxu0 0.0
    %1270 = vmatprep.subr.mxu0 0.0
    %1271 = vmatpush1.msra.mxu0 0.0
    %1272 = vmatprep.subr.mxu0 0.0
    %1273 = vmatpush1.msra.mxu0 0.0
    %1274 = vmatprep.subr.mxu0 0.0
    %1275 = vmatpush1.msra.mxu0 0.0
    %1276 = vmatprep.subr.mxu0 0.0
    %1277 = vmatpush1.msra.mxu0 0.0
    %1278 = vmatprep.subr.mxu0 0.0
    %1279 = vmatpush1.msra.mxu0 0.0
    %1280 = vmatprep.subr.mxu0 0.0
    %1281 = vmatpush1.msra.mxu0 0.0
    %1282 = vmatprep.subr.mxu0 0.0
    %1283 = vmatpush1.msra.mxu0 0.0
    %1284 = vmatprep.subr.mxu0 0.0
    %1285 = vmatpush1.msra.mxu0 0.0
    %1286 = vmatprep.subr.mxu0 0.0
    %1287 = vmatpush1.msra.mxu0 0.0
    %1288 = vmatprep.subr.mxu0 0.0
    %1289 = vmatpush1.msra.mxu0 0.0
    %1290 = vmatprep.subr.mxu0 0.0
    %1291 = vmatpush1.msra.mxu0 0.0
    %1292 = vmatprep.subr.mxu0 0.0
    %1293 = vmatpush1.msra.mxu0 0.0
    %1294 = vmatprep.subr.mxu0 0.0
    %1295 = vmatpush1.msra.mxu0 0.0
    %1296 = vmatprep.subr.mxu0 0.0
    %1297 = vmatpush1.msra.mxu0 0.0
    %1298 = vmatprep.subr.mxu0 0.0
    %1299 = vmatpush1.msra.mxu0 0.0
    %1300 = vmatprep.subr.mxu0 0.0
    %1301 = vmatpush1.msra.mxu0 0.0
    %1302 = vmatprep.subr.mxu0 0.0
    %1303 = vmatpush1.msra.mxu0 0.0
    %1304 = vmatprep.subr.mxu0 0.0
    %1305 = vmatpush1.msra.mxu0 0.0
    %1306 = vmatprep.subr.mxu0 0.0
    %1307 = vmatpush1.msra.mxu0 0.0
    %1308 = vmatprep.subr.mxu0 0.0
    %1309 = vmatpush1.msra.mxu0 0.0
    %1310 = vmatprep.subr.mxu0 0.0
    %1311 = vmatpush1.msra.mxu0 0.0
    %1312 = vmatprep.subr.mxu0 0.0
    %1313 = vmatpush1.msra.mxu0 0.0
    %1314 = vmatprep.subr.mxu0 0.0
    %1315 = vmatpush1.msra.mxu0 0.0
    %1316 = vmatprep.subr.mxu0 0.0
    %1317 = vmatpush1.msra.mxu0 0.0
    %1318 = vmatprep.mubr.f32.mxu0 0.0
    %1319 = vmatmul.mubr.f32.gmra.mrb[0].mxu0 %v1252
    %v1320 = vpop.f32.mrb[0].mxu0
    %v1321 = vadd.f32 0.0, %v1320
    %v1322 = vpop.f32.mrb[0].mxu0
    %1323 = vdwg.mxu0
    %v1325 = vsel %vm700, %v812, 0
    %1327 = vmatprep.subr.mxu0 0.0
    %1328 = vmatpush1.msra.mxu0 %v90
    %1329 = vmatprep.subr.mxu0 0.0
    %1330 = vmatpush1.msra.mxu0 0.0
    %1331 = vmatprep.subr.mxu0 0.0
    %1332 = vmatpush1.msra.mxu0 0.0
    %1333 = vmatprep.subr.mxu0 0.0
    %1334 = vmatpush1.msra.mxu0 0.0
    %1335 = vmatprep.subr.mxu0 0.0
    %1336 = vmatpush1.msra.mxu0 0.0
    %1337 = vmatprep.subr.mxu0 0.0
    %1338 = vmatpush1.msra.mxu0 0.0
    %1339 = vmatprep.subr.mxu0 0.0
    %1340 = vmatpush1.msra.mxu0 0.0
    %1341 = vmatprep.subr.mxu0 0.0
    %1342 = vmatpush1.msra.mxu0 0.0
    %1343 = vmatprep.subr.mxu0 0.0
    %1344 = vmatpush1.msra.mxu0 0.0
    %1345 = vmatprep.subr.mxu0 0.0
    %1346 = vmatpush1.msra.mxu0 0.0
    %1347 = vmatprep.subr.mxu0 0.0
    %1348 = vmatpush1.msra.mxu0 0.0
    %1349 = vmatprep.subr.mxu0 0.0
    %1350 = vmatpush1.msra.mxu0 0.0
    %1351 = vmatprep.subr.mxu0 0.0
    %1352 = vmatpush1.msra.mxu0 0.0
    %1353 = vmatprep.subr.mxu0 0.0
    %1354 = vmatpush1.msra.mxu0 0.0
    %1355 = vmatprep.subr.mxu0 0.0
    %1356 = vmatpush1.msra.mxu0 0.0
    %1357 = vmatprep.subr.mxu0 0.0
    %1358 = vmatpush1.msra.mxu0 0.0
    %1359 = vmatprep.subr.mxu0 0.0
    %1360 = vmatpush1.msra.mxu0 0.0
    %1361 = vmatprep.subr.mxu0 0.0
    %1362 = vmatpush1.msra.mxu0 0.0
    %1363 = vmatprep.subr.mxu0 0.0
    %1364 = vmatpush1.msra.mxu0 0.0
    %1365 = vmatprep.subr.mxu0 0.0
    %1366 = vmatpush1.msra.mxu0 0.0
    %1367 = vmatprep.subr.mxu0 0.0
    %1368 = vmatpush1.msra.mxu0 0.0
    %1369 = vmatprep.subr.mxu0 0.0
    %1370 = vmatpush1.msra.mxu0 0.0
    %1371 = vmatprep.subr.mxu0 0.0
    %1372 = vmatpush1.msra.mxu0 0.0
    %1373 = vmatprep.subr.mxu0 0.0
    %1374 = vmatpush1.msra.mxu0 0.0
    %1375 = vmatprep.subr.mxu0 0.0
    %1376 = vmatpush1.msra.mxu0 0.0
    %1377 = vmatprep.subr.mxu0 0.0
    %1378 = vmatpush1.msra.mxu0 0.0
    %1379 = vmatprep.subr.mxu0 0.0
    %1380 = vmatpush1.msra.mxu0 0.0
    %1381 = vmatprep.subr.mxu0 0.0
    %1382 = vmatpush1.msra.mxu0 0.0
    %1383 = vmatprep.subr.mxu0 0.0
    %1384 = vmatpush1.msra.mxu0 0.0
    %1385 = vmatprep.subr.mxu0 0.0
    %1386 = vmatpush1.msra.mxu0 0.0
    %1387 = vmatprep.subr.mxu0 0.0
    %1388 = vmatpush1.msra.mxu0 0.0
    %1389 = vmatprep.subr.mxu0 0.0
    %1390 = vmatpush1.msra.mxu0 0.0
    %1391 = vmatprep.mubr.f32.mxu0 0.0
    %1392 = vmatmul.mubr.f32.gmra.mrb[0].mxu0 %v1325
    %v1393 = vpop.f32.mrb[0].mxu0
    %v1394 = vadd.f32 0.0, %v1393
    %v1395 = vpop.f32.mrb[0].mxu0
    %1396 = vdwg.mxu0
    %1397 = vst.msk [vmem:[#allocation8] sm:$0xff] %vm91, %v883
    %1398 = vst.msk [vmem:[#allocation8 + $0x8] sm:$0xff] %vm91, %v956
    %1399 = vst.msk [vmem:[#allocation8 + $0x10] sm:$0xff] %vm91, %v1029
    %1400 = vst.msk [vmem:[#allocation8 + $0x18] sm:$0xff] %vm91, %v1102
    %1401 = vst.msk [vmem:[#allocation8 + $0x20] sm:$0xff] %vm91, %v1175
    %1402 = vst.msk [vmem:[#allocation8 + $0x28] sm:$0xff] %vm91, %v1248
    %1403 = vst.msk [vmem:[#allocation8 + $0x30] sm:$0xff] %vm91, %v1321
    %1404 = vst.msk [vmem:[#allocation8 + $0x38] sm:$0xff] %vm91, %v1394
    %1405 = vst.msk [vmem:[#allocation9] sm:$0xff] %vm700, %v805
    %1406 = vst.msk [vmem:[#allocation9 + $0x8] sm:$0xff] %vm700, %v806
    %1407 = vst.msk [vmem:[#allocation9 + $0x10] sm:$0xff] %vm700, %v807
    %1408 = vst.msk [vmem:[#allocation9 + $0x18] sm:$0xff] %vm700, %v808
    %1409 = vst.msk [vmem:[#allocation9 + $0x20] sm:$0xff] %vm700, %v809
    %1410 = vst.msk [vmem:[#allocation9 + $0x28] sm:$0xff] %vm700, %v810
    %1411 = vst.msk [vmem:[#allocation9 + $0x30] sm:$0xff] %vm700, %v811
    %1412 = vst.msk [vmem:[#allocation9 + $0x38] sm:$0xff] %vm700, %v812
    // Predicated region
    $region26: #{tpu_custom_call.1} parent=1 // pred_check
      _
    $region27: #{tpu_custom_call.1} parent=1 // pred_check_branch
      %1414 = sbr.rel (0) target = $region29
    $region28: #{tpu_custom_call.1} parent=1 // pred_region
      %s1416 = ssub.s32 1024, 1024
      %1417 = vsyncadd [#allocation4], %s1416
      %s1418 = sshll.u32 [#allocation8], 4
      %s1419 = int_to_ptr.vmem [resolvable:$true] %s1418
      %1424 = dma.vmem_to_hbm [thread:$0]  %s1419, 1024, %s3, [#allocation4], 128, 128, 8
    $region29: #{tpu_custom_call.1} parent=1 // pred_fallthru
      _
    // Predicated region
    $region30: #{tpu_custom_call.1} parent=1 // pred_check
      _
    $region31: #{tpu_custom_call.1} parent=1 // pred_check_branch
      %1426 = sbr.rel (0) target = $region33
    $region32: #{tpu_custom_call.1} parent=1 // pred_region
      %s1428 = ssub.s32 1024, 1024
      %1429 = vsyncadd [#allocation10], %s1428
      %s1430 = sshll.u32 [#allocation9], 4
      %s1431 = int_to_ptr.vmem [resolvable:$true] %s1430
      %1436 = dma.vmem_to_hbm [thread:$0]  %s1431, 1024, %s4, [#allocation10], 128, 128, 8
    $region33: #{tpu_custom_call.1} parent=1 // pred_fallthru
      _
    // Predicated region
    $region34: #{tpu_custom_call.1} parent=1 // pred_check
      _
    $region35: #{tpu_custom_call.1} parent=1 // pred_check_branch
      %1438 = sbr.rel (0) target = $region37
    $region36: #{tpu_custom_call.1} parent=1 // pred_region
      %1439 = dma.done [#allocation4], 1024
    $region37: #{tpu_custom_call.1} parent=1 // pred_fallthru
      _
    // Predicated region
    $region38: #{tpu_custom_call.1} parent=1 // pred_check
      _
    $region39: #{tpu_custom_call.1} parent=1 // pred_check_branch
      %1441 = sbr.rel (0) target = $region41
    $region40: #{tpu_custom_call.1} parent=1 // pred_region
      %1442 = dma.done [#allocation10], 1024
    $region41: #{tpu_custom_call.1} parent=1 // pred_fallthru
      _
    %1443 = vsyncpa [#allocation3], 1
    %1444 = vsyncpa [#allocation6], 1
    %1445 = vsyncpa [#allocation4], 1
    %1446 = vsyncpa [#allocation10], 1

</llo_original>
